<compile_context>
chip_gen: v7x
topology: tpu7x:2x2x1
jax: 0.10.0
libtpu: 0.0.40
codegen_flags: <defaults>
</compile_context>

<pallas_src>
import functools

import jax
import jax.numpy as jnp
from jax import lax
from jax.experimental import pallas as pl
from jax.experimental.pallas import tpu as pltpu


def _cifs_kernel(feat_ref, wt_ref, b_ref, masked_ref, pred_ref, *, n_cls):
    # feat_ref:   (BN, C, HW)   native NCHW (flattened spatial) layout
    # wt_ref:     (C, NCP)      probe weight^T, class dim zero-padded to NCP
    # b_ref:      (1, NCP)      probe bias, zero-padded
    # masked_ref: (BN, C, HW)
    # pred_ref:   (BN, NCP)     padded logits (wrapper slices back to n_cls)
    feat = feat_ref[...]
    wt = wt_ref[...]
    b = b_ref[...]

    bn, c, hw = feat.shape
    ncp = wt.shape[1]
    inv_hw = jnp.float32(1.0 / hw)

    # On-chip minor-dims swap so C sits lane-dense for the channel-path compute;
    # the heavy feat data never takes an extra trip through HBM for this.
    feat_t = jnp.swapaxes(feat, 1, 2)                                  # (BN, HW, C)

    # --- global average pool over the spatial (sublane) axis ---
    g = jnp.sum(feat_t, axis=1) * inv_hw                               # (BN, C)

    # --- probe linear layer: logits = g @ W.T + b  (class dim padded to NCP) ---
    logits = jnp.dot(g, wt, preferred_element_type=jnp.float32) + b    # (BN, NCP)
    pred_ref[...] = logits

    # --- top-2 class selection (first-occurrence tie-break, like torch.topk);
    #     padded class lanes forced to -inf so they can never be selected ---
    idx = lax.broadcasted_iota(jnp.int32, (bn, ncp), 1)
    neg_inf = jnp.float32(-jnp.inf)
    logits_v = jnp.where(idx < n_cls, logits, neg_inf)
    big = jnp.int32(ncp)

    m1 = jnp.max(logits_v, axis=1, keepdims=True)
    i1 = jnp.min(jnp.where(logits_v == m1, idx, big), axis=1, keepdims=True)
    oh1 = (idx == i1).astype(jnp.float32)                              # one-hot of top-1

    logits2 = jnp.where(idx == i1, neg_inf, logits_v)
    m2 = jnp.max(logits2, axis=1, keepdims=True)
    i2 = jnp.min(jnp.where(logits2 == m2, idx, big), axis=1, keepdims=True)
    oh2 = (idx == i2).astype(jnp.float32)                              # one-hot of top-2

    # --- analytic gradient of (top1 + top2 logits) w.r.t. feat ---
    # d logits[n,k] / d feat[n,c,h,w] = W[k,c] / (H*W)   (constant over h,w).
    grad_c = lax.dot_general(
        oh1 + oh2, wt,
        dimension_numbers=(((1,), (1,)), ((), ())),
        preferred_element_type=jnp.float32) * inv_hw                   # (BN, C)

    # --- softmax over flattened (C*H*W); grad is constant per channel, so the
    #     denominator picks up an exact factor of H*W per channel ---
    mx = jnp.max(grad_c, axis=1, keepdims=True)
    e = jnp.exp(grad_c - mx)                                           # (BN, C)
    denom = jnp.sum(e, axis=1, keepdims=True) * jnp.float32(hw)
    mask_c = e / denom                                                 # (BN, C)

    # per-channel mask broadcast along the spatial axis; swap back to NCHW layout.
    masked_t = feat_t * mask_c[:, None, :]                             # (BN, HW, C)
    masked_ref[...] = jnp.swapaxes(masked_t, 1, 2)                     # (BN, C, HW)


def _vmem_capacity_bytes(default=128 * 1024 * 1024):
    try:
        return int(pltpu.get_tpu_info().vmem_capacity_bytes)
    except Exception:
        return default


def _pick_block_n(n, hw, c):
    """Pick BN so each feat block is ~5-8 MiB: large enough to amortize the
    ~0.35us/step overhead, small enough that 4 pipeline buffers + the in-kernel
    transposed temporaries stay well inside VMEM even on v7x (64 MiB/TC)."""
    target_bytes = 8 * 1024 * 1024
    if _vmem_capacity_bytes() <= 64 * 1024 * 1024:   # v7x: 64 MiB per TensorCore
        target_bytes = 5 * 1024 * 1024
    hw_pad = ((hw + 127) // 128) * 128
    c_pad = ((c + 7) // 8) * 8
    per_sample = hw_pad * c_pad * 4
    bn = max(1, target_bytes // per_sample)
    bn = int(min(bn, n))
    # Keep >= 2 grid steps when possible: the batch axis is "parallel" so it can
    # shard across v7x's two TensorCores (near-free no-op on v5e/v6e).
    if bn == n and n > 1:
        bn = (n + 1) // 2
    return bn


def cifs_forward(feat_nchw, w, b, *, block_n=None):
    """CIFS eval forward.  feat_nchw: (N, C, H, W) f32;  w: (n_cls, C);  b: (n_cls,).
    Returns (masked_feat (N,C,H,W), pred_raw (N,n_cls))."""
    N, C, H, W = feat_nchw.shape
    n_cls = w.shape[0]
    HW = H * W
    NCP = ((n_cls + 127) // 128) * 128          # class dim padded to full lane width

    # Free reshape only -- no layout round-trip through HBM.
    feat3 = feat_nchw.reshape(N, C, HW).astype(jnp.float32)
    wt = jnp.zeros((C, NCP), jnp.float32).at[:, :n_cls].set(
        jnp.transpose(w).astype(jnp.float32))
    b2 = jnp.zeros((1, NCP), jnp.float32).at[:, :n_cls].set(
        b.reshape(1, n_cls).astype(jnp.float32))

    BN = int(block_n) if block_n is not None else _pick_block_n(N, HW, C)
    BN = max(1, min(BN, N))
    if BN < N:
        BN = max(8, (BN // 8) * 8)              # keep pred block sublane-dim 8-aligned
        if BN >= N:
            BN = N
    grid = (pl.cdiv(N, BN),)

    # VMEM budget: double-buffered feat-in + masked-out blocks, the in-kernel
    # transposed temporaries, small pred blocks, the resident padded W / b, plus
    # slack; clamp to physical VMEM minus headroom.
    hw_pad = ((HW + 127) // 128) * 128
    c_pad = ((C + 7) // 8) * 8
    feat_blk_bytes = BN * c_pad * hw_pad * 4
    pred_blk_bytes = max(8, BN) * NCP * 4
    wb_bytes = (c_pad + 8) * NCP * 4
    vmem_needed = (2 * 2 * feat_blk_bytes          # pipelined feat in + masked out
                   + 2 * feat_blk_bytes            # feat_t / masked_t temporaries
                   + 2 * 2 * pred_blk_bytes
                   + 2 * wb_bytes
                   + (4 << 20))                    # slack
    vmem_cap = _vmem_capacity_bytes()
    vmem_limit = int(max(16 * 1024 * 1024,
                         min(vmem_needed, vmem_cap - 8 * 1024 * 1024)))

    cost = pl.CostEstimate(
        flops=int(2 * 2 * N * C * NCP + 2 * N * HW * C),
        transcendentals=int(N * C),
        bytes_accessed=int(2 * N * HW * C * 4 + C * NCP * 4 + N * NCP * 4),
    )

    kernel = functools.partial(_cifs_kernel, n_cls=n_cls)

    masked3, pred_p = pl.pallas_call(
        kernel,
        out_shape=(
            jax.ShapeDtypeStruct((N, C, HW), jnp.float32),
            jax.ShapeDtypeStruct((N, NCP), jnp.float32),
        ),
        grid_spec=pltpu.PrefetchScalarGridSpec(
            num_scalar_prefetch=0,
            grid=grid,
            in_specs=[
                pl.BlockSpec((BN, C, HW), lambda i: (i, 0, 0)),
                pl.BlockSpec((C, NCP), lambda i: (0, 0)),   # constant -> DMA'd once
                pl.BlockSpec((1, NCP), lambda i: (0, 0)),   # constant -> DMA'd once
            ],
            out_specs=(
                pl.BlockSpec((BN, C, HW), lambda i: (i, 0, 0)),
                pl.BlockSpec((BN, NCP), lambda i: (i, 0)),
            ),
        ),
        compiler_params=pltpu.CompilerParams(
            dimension_semantics=("parallel",),
            vmem_limit_bytes=vmem_limit,
        ),
        cost_estimate=cost,
    )(feat3, wt, b2)

    masked = masked3.reshape(N, C, H, W)        # free reshape, no transpose
    pred = pred_p[:, :n_cls]
    return masked, pred


def _reference(feat, w, b):
    N, C, H, W = feat.shape
    g = jnp.mean(feat, axis=(2, 3))
    logits = g @ w.T + b
    _, top2 = lax.top_k(logits, 2)
    grad = (w[top2[:, 0]] + w[top2[:, 1]]) / (H * W)          # (N, C)
    grad_full = jnp.broadcast_to(grad[:, :, None, None], (N, C, H, W))
    mask = jax.nn.softmax(grad_full.reshape(N, -1), axis=1).reshape(N, C, H, W)
    return feat * mask, logits


if __name__ == "__main__":
    key = jax.random.PRNGKey(0)
    k_feat, k_w, k_b = jax.random.split(key, 3)

    # Small shapes consistent with the module: feat (N, C, H, W), Probe = Linear(C, n_cls)
    N, C, H, W, n_cls = 16, 128, 16, 16, 10

    feat = jax.random.normal(k_feat, (N, C, H, W), dtype=jnp.float32)
    bound = 1.0 / jnp.sqrt(C)  # PyTorch default nn.Linear init range
    w = jax.random.uniform(k_w, (n_cls, C), minval=-bound, maxval=bound, dtype=jnp.float32)
    b = jax.random.uniform(k_b, (n_cls,), minval=-bound, maxval=bound, dtype=jnp.float32)

    # Force a batch-tiled grid (2 steps) to exercise the pipelined path.
    masked_feat, pred_raw = cifs_forward(feat, w, b, block_n=8)
    jax.block_until_ready((masked_feat, pred_raw))

    ref_masked, ref_pred = _reference(feat, w, b)
    assert jnp.allclose(pred_raw, ref_pred, atol=1e-5, rtol=1e-5)
    assert jnp.allclose(masked_feat, ref_masked, atol=1e-6, rtol=1e-5)

    # Also run with the auto-picked block size as a sanity check.
    masked_auto, pred_auto = cifs_forward(feat, w, b)
    jax.block_until_ready((masked_auto, pred_auto))
    assert jnp.allclose(pred_auto, ref_pred, atol=1e-5, rtol=1e-5)
    assert jnp.allclose(masked_auto, ref_masked, atol=1e-6, rtol=1e-5)

    print("KERNEL_OK")
</pallas_src>

<mosaic_0001>
module attributes {stable_mosaic.version = 11 : i64} {
  func.func @_cifs_kernel(%arg0: i32, %arg1: memref<8x128x256xf32, #tpu.memory_space<vmem>>, %arg2: memref<128x128xf32, #tpu.memory_space<vmem>>, %arg3: memref<1x128xf32, #tpu.memory_space<vmem>>, %arg4: memref<8x128x256xf32, #tpu.memory_space<vmem>>, %arg5: memref<8x128xf32, #tpu.memory_space<vmem>>) attributes {dimension_semantics = [#tpu.dimension_semantics<parallel>], iteration_bounds = array<i64: 2>, scalar_prefetch = 0 : i64, scratch_operands = 0 : i64, tpu.core_type = #tpu.core_type<tc>, window_params = [{transform_indices = @transform_0, window_bounds = array<i64: 8, 128, 256>}, {pipeline_mode = #tpu.pipeline_mode<synchronous>, transform_indices = @transform_1, window_bounds = array<i64: 128, 128>}, {pipeline_mode = #tpu.pipeline_mode<synchronous>, transform_indices = @transform_2, window_bounds = array<i64: 1, 128>}, {transform_indices = @transform_3, window_bounds = array<i64: 8, 128, 256>}, {transform_indices = @transform_4, window_bounds = array<i64: 8, 128>}]} {
    %c0 = arith.constant 0 : index
    %c0_0 = arith.constant 0 : index
    %c0_1 = arith.constant 0 : index
    %0 = vector.load %arg1[%c0, %c0_0, %c0_1] : memref<8x128x256xf32, #tpu.memory_space<vmem>>, vector<8x128x256xf32>
    %c0_2 = arith.constant 0 : index
    %c0_3 = arith.constant 0 : index
    %1 = vector.load %arg2[%c0_2, %c0_3] : memref<128x128xf32, #tpu.memory_space<vmem>>, vector<128x128xf32>
    %c0_4 = arith.constant 0 : index
    %c0_5 = arith.constant 0 : index
    %2 = vector.load %arg3[%c0_4, %c0_5] : memref<1x128xf32, #tpu.memory_space<vmem>>, vector<1x128xf32>
    %3 = tpu.transpose %0, [0, 2, 1] : vector<8x128x256xf32> -> vector<8x256x128xf32>
    %cst = arith.constant dense<0.000000e+00> : vector<8x128xf32>
    %4 = vector.multi_reduction <add>, %3, %cst [1] : vector<8x256x128xf32> to vector<8x128xf32>
    %cst_6 = arith.constant 3.906250e-03 : f32
    %5 = vector.broadcast %cst_6 : f32 to vector<8x128xf32>
    %6 = arith.mulf %4, %5 : vector<8x128xf32>
    %cst_7 = arith.constant dense<0.000000e+00> : vector<8x128xf32>
    %7 = tpu.matmul %6, %1, %cst_7 {dimension_numbers = #tpu.dot_dimension_numbers<[1], [0], [0], [1], [0, 0, 1, 1], [], []>} : vector<8x128xf32>, vector<128x128xf32>, vector<8x128xf32> -> vector<8x128xf32>
    %8 = vector.broadcast %2 : vector<1x128xf32> to vector<8x128xf32>
    %9 = arith.addf %7, %8 : vector<8x128xf32>
    %c0_8 = arith.constant 0 : index
    %c0_9 = arith.constant 0 : index
    %10 = vector.load %arg5[%c0_8, %c0_9] : memref<8x128xf32, #tpu.memory_space<vmem>>, vector<8x128xf32>
    tpu.vector_store %arg5[%c0_8, %c0_9], %9 {strides = array<i32>} : memref<8x128xf32, #tpu.memory_space<vmem>>, vector<8x128xf32>,
    %11 = tpu.iota {dimensions = array<i32: 1>} : vector<8x128xi32>
    %c10_i32 = arith.constant 10 : i32
    %12 = vector.broadcast %c10_i32 : i32 to vector<8x128xi32>
    %13 = arith.cmpi slt, %11, %12 : vector<8x128xi32>
    %cst_10 = arith.constant 0xFF800000 : f32
    %14 = vector.broadcast %cst_10 : f32 to vector<8x128xf32>
    %15 = arith.select %13, %9, %14 : vector<8x128xi1>, vector<8x128xf32>
    %cst_11 = arith.constant dense<0xFF800000> : vector<8xf32>
    %16 = vector.multi_reduction <maximumf>, %15, %cst_11 [1] : vector<8x128xf32> to vector<8xf32>
    %17 = vector.shape_cast %16 : vector<8xf32> to vector<8x1xf32>
    %18 = vector.broadcast %17 : vector<8x1xf32> to vector<8x128xf32>
    %19 = arith.cmpf oeq, %15, %18 : vector<8x128xf32>
    %c128_i32 = arith.constant 128 : i32
    %20 = vector.broadcast %c128_i32 : i32 to vector<8x128xi32>
    %21 = arith.select %19, %11, %20 : vector<8x128xi1>, vector<8x128xi32>
    %cst_12 = arith.constant dense<2147483647> : vector<8xi32>
    %22 = vector.multi_reduction <minsi>, %21, %cst_12 [1] : vector<8x128xi32> to vector<8xi32>
    %23 = vector.shape_cast %22 : vector<8xi32> to vector<8x1xi32>
    %24 = vector.broadcast %23 : vector<8x1xi32> to vector<8x128xi32>
    %25 = arith.cmpi eq, %11, %24 : vector<8x128xi32>
    %26 = arith.extui %25 : vector<8x128xi1> to vector<8x128xi32>
    %27 = arith.sitofp %26 : vector<8x128xi32> to vector<8x128xf32>
    %28 = vector.broadcast %23 : vector<8x1xi32> to vector<8x128xi32>
    %29 = arith.cmpi eq, %11, %28 : vector<8x128xi32>
    %cst_13 = arith.constant 0xFF800000 : f32
    %30 = vector.broadcast %cst_13 : f32 to vector<8x128xf32>
    %31 = arith.select %29, %30, %15 : vector<8x128xi1>, vector<8x128xf32>
    %cst_14 = arith.constant dense<0xFF800000> : vector<8xf32>
    %32 = vector.multi_reduction <maximumf>, %31, %cst_14 [1] : vector<8x128xf32> to vector<8xf32>
    %33 = vector.shape_cast %32 : vector<8xf32> to vector<8x1xf32>
    %34 = vector.broadcast %33 : vector<8x1xf32> to vector<8x128xf32>
    %35 = arith.cmpf oeq, %31, %34 : vector<8x128xf32>
    %c128_i32_15 = arith.constant 128 : i32
    %36 = vector.broadcast %c128_i32_15 : i32 to vector<8x128xi32>
    %37 = arith.select %35, %11, %36 : vector<8x128xi1>, vector<8x128xi32>
    %cst_16 = arith.constant dense<2147483647> : vector<8xi32>
    %38 = vector.multi_reduction <minsi>, %37, %cst_16 [1] : vector<8x128xi32> to vector<8xi32>
    %39 = vector.shape_cast %38 : vector<8xi32> to vector<8x1xi32>
    %40 = vector.broadcast %39 : vector<8x1xi32> to vector<8x128xi32>
    %41 = arith.cmpi eq, %11, %40 : vector<8x128xi32>
    %42 = arith.extui %41 : vector<8x128xi1> to vector<8x128xi32>
    %43 = arith.sitofp %42 : vector<8x128xi32> to vector<8x128xf32>
    %44 = arith.addf %27, %43 : vector<8x128xf32>
    %cst_17 = arith.constant dense<0.000000e+00> : vector<8x128xf32>
    %45 = tpu.matmul %44, %1, %cst_17 {dimension_numbers = #tpu.dot_dimension_numbers<[1], [1], [0], [0], [0, 0, 1, 0], [], []>} : vector<8x128xf32>, vector<128x128xf32>, vector<8x128xf32> -> vector<8x128xf32>
    %cst_18 = arith.constant 3.906250e-03 : f32
    %46 = vector.broadcast %cst_18 : f32 to vector<8x128xf32>
    %47 = arith.mulf %45, %46 : vector<8x128xf32>
    %cst_19 = arith.constant dense<0xFF800000> : vector<8xf32>
    %48 = vector.multi_reduction <maximumf>, %47, %cst_19 [1] : vector<8x128xf32> to vector<8xf32>
    %49 = vector.shape_cast %48 : vector<8xf32> to vector<8x1xf32>
    %50 = vector.broadcast %49 : vector<8x1xf32> to vector<8x128xf32>
    %51 = arith.subf %47, %50 : vector<8x128xf32>
    %52 = math.exp %51 : vector<8x128xf32>
    %cst_20 = arith.constant dense<0.000000e+00> : vector<8xf32>
    %53 = vector.multi_reduction <add>, %52, %cst_20 [1] : vector<8x128xf32> to vector<8xf32>
    %54 = vector.shape_cast %53 : vector<8xf32> to vector<8x1xf32>
    %cst_21 = arith.constant 2.560000e+02 : f32
    %55 = vector.broadcast %cst_21 : f32 to vector<8x1xf32>
    %56 = arith.mulf %54, %55 : vector<8x1xf32>
    %57 = vector.broadcast %56 : vector<8x1xf32> to vector<8x128xf32>
    %58 = arith.divf %52, %57 : vector<8x128xf32>
    %59 = vector.shape_cast %58 : vector<8x128xf32> to vector<8x1x128xf32>
    %60 = vector.broadcast %59 : vector<8x1x128xf32> to vector<8x256x128xf32>
    %61 = arith.mulf %3, %60 : vector<8x256x128xf32>
    %62 = tpu.transpose %61, [0, 2, 1] : vector<8x256x128xf32> -> vector<8x128x256xf32>
    %c0_22 = arith.constant 0 : index
    %c0_23 = arith.constant 0 : index
    %c0_24 = arith.constant 0 : index
    %63 = vector.load %arg4[%c0_22, %c0_23, %c0_24] : memref<8x128x256xf32, #tpu.memory_space<vmem>>, vector<8x128x256xf32>
    tpu.vector_store %arg4[%c0_22, %c0_23, %c0_24], %62 {strides = array<i32>} : memref<8x128x256xf32, #tpu.memory_space<vmem>>, vector<8x128x256xf32>,
    return
  }
  func.func @transform_0(%arg0: i32) -> (i32, i32, i32) {
    %c0_i32 = arith.constant 0 : i32
    %c0_i32_0 = arith.constant 0 : i32
    %c0_i32_1 = arith.constant 0 : i32
    return %arg0, %c0_i32, %c0_i32_0 : i32, i32, i32
  }
  func.func @transform_1(%arg0: i32) -> (i32, i32) {
    %c0_i32 = arith.constant 0 : i32
    %c0_i32_0 = arith.constant 0 : i32
    %c0_i32_1 = arith.constant 0 : i32
    return %c0_i32, %c0_i32_0 : i32, i32
  }
  func.func @transform_2(%arg0: i32) -> (i32, i32) {
    %c0_i32 = arith.constant 0 : i32
    %c0_i32_0 = arith.constant 0 : i32
    %c0_i32_1 = arith.constant 0 : i32
    return %c0_i32, %c0_i32_0 : i32, i32
  }
  func.func @transform_3(%arg0: i32) -> (i32, i32, i32) {
    %c0_i32 = arith.constant 0 : i32
    %c0_i32_0 = arith.constant 0 : i32
    %c0_i32_1 = arith.constant 0 : i32
    return %arg0, %c0_i32, %c0_i32_0 : i32, i32, i32
  }
  func.func @transform_4(%arg0: i32) -> (i32, i32) {
    %c0_i32 = arith.constant 0 : i32
    %c0_i32_0 = arith.constant 0 : i32
    return %arg0, %c0_i32 : i32, i32
  }
}

</mosaic_0001>

<llo_original>
// kernel: tpu_custom_call.1
$region0: #{tpu_custom_call.1}
  #allocation0 [shape = 'u32[]', space=smem, size = 0x4, offset = 0x4, fixed_abs, tag = 'smem constant byte address 0x4 - core index']
  #allocation1 [shape = 'u32[144,128]{1,0:T(1,128)}', space=vmem, size = 0x12000, scoped, tag = 'internal scratch']
  %s0 = inlined_call_operand.hbm [shape: f32[16,128,256], index: 0, kind: input, shape index: {}]
  %s1 = inlined_call_operand.hbm [shape: f32[128,128], index: 1, kind: input, shape index: {}]
  %s2 = inlined_call_operand.hbm [shape: f32[1,128], index: 2, kind: input, shape index: {}]
  %s3 = inlined_call_operand.hbm [shape: f32[16,128,256], index: 3, kind: output, shape index: {0}]
  %s4 = inlined_call_operand.hbm [shape: f32[16,128], index: 4, kind: output, shape index: {1}]
  %5 = xla_tuple %s3, %s4
  %s6 = sld [smem:[#allocation0]]
  $region65: #{tpu_custom_call.1} parent=0
    _
  %s8 = ssub.s32 1, %s6
  %s9 = scalar_select 0, %s8, %s6
  $region1: #{tpu_custom_call.1} parent=0
    #allocation2 [shape = 'u8[2097152]{0}', space=vmem, size = 0x200000, scoped, tag = 'input window, operand 0']
    #allocation3 [shape = 's32[2]{0}', space=sflag, size = 0x8, scoped, tag = 'scoped memory for tpu_custom_call.1']
    #allocation4 [shape = 's32[2]{0}', space=sflag, size = 0x8, scoped, tag = 'scoped memory for tpu_custom_call.1']
    #allocation5 [shape = 'u8[65536]{0}', space=vmem, size = 0x10000, scoped, tag = 'input window, operand 1, single buffered']
    #allocation6 [shape = 's32[1]{0}', space=sflag, size = 0x4, scoped, tag = 'scoped memory for tpu_custom_call.1']
    #allocation7 [shape = 'u8[512]{0}', space=vmem, size = 0x400, scoped, tag = 'input window, operand 2, single buffered']
    #allocation8 [shape = 'u8[2097152]{0}', space=vmem, size = 0x200000, scoped, tag = 'output window, operand 0']
    #allocation9 [shape = 'u8[8192]{0}', space=vmem, size = 0x2000, scoped, tag = 'output window, operand 1']
    #allocation10 [shape = 's32[2]{0}', space=sflag, size = 0x8, scoped, tag = 'scoped memory for tpu_custom_call.1']
    %10 = vsyncpa [#allocation3], 0
    %s11 = scalar_lea.sflag [#allocation3], 1
    %12 = vsyncpa %s11, 0
    %13 = vsyncpa [#allocation6], 0
    %14 = vsyncpa [#allocation4], 0
    %s15 = scalar_lea.sflag [#allocation4], 1
    %16 = vsyncpa %s15, 0
    %17 = vsyncpa [#allocation10], 0
    %s18 = scalar_lea.sflag [#allocation10], 1
    %19 = vsyncpa %s18, 0
    loop: start=0, step=1, limit=4
    $region2: #{tpu_custom_call.1} parent=1 // loop_pre_header
      _
    $region3: #{tpu_custom_call.1} parent=1 // loop_header
      %s21 = sphi 0, %s25
      %p22 = scmp.ge.s32.totalorder %s21, 4
      %s31 = sphi 0, %s33
      %s34 = sphi 0, %s31
      %s35 = sphi 0, %s34
      %s51 = sphi 0, %s35
      %s55 = sphi 0, %s55
      %s57 = sphi 0, %s55
      %s58 = sphi 0, %s57
      %s72 = sphi 0, %s58
      %s76 = sphi 0, %s76
      %s78 = sphi 0, %s76
      %s79 = sphi 0, %s78
      %s93 = sphi 0, %s79
      %s99 = sphi 0, %s101
      %s102 = sphi 0, %s99
      %s103 = sphi 0, %s102
      %s119 = sphi 0, %s103
      %s125 = sphi 0, %s127
      %s128 = sphi 0, %s125
      %s129 = sphi 0, %s128
      %s145 = sphi 0, %s129
    $region4: #{tpu_custom_call.1} parent=1 // loop_header_branch
      %24 = sbr.rel (%p22) target = $region8
    $region5: #{tpu_custom_call.1} parent=1 // loop_body
      %s26 = ssub.s32 %s21, 1
      %s27 = ssub.s32 %s21, 2
      %s28 = sadd.s32 %s21, 1
      %s29 = ssub.s32 %s21, %s28
      %p30 = scmp.eq.s32.totalorder %s29, 0
      %s32 = sadd.s32 %s31, 1
      %s33 = scalar_select %p30, %s31, %s32
      %p36 = pneg %p30
      %p37 = scmp.eq.s32.totalorder %s21, 1
      %p38 = por %p36, %p37
      %p39 = scmp.ne.s32.totalorder %s31, %s34
      %p40 = scmp.eq.s32.totalorder %s21, 0
      %p41 = por %p39, %p40
      %p42 = scmp.ne.s32.totalorder %s31, %s34
      %p43 = scmp.eq.s32.totalorder %s26, 1
      %p44 = por %p42, %p43
      %p45 = scmp.ne.s32.totalorder %s34, %s35
      %p46 = scmp.eq.s32.totalorder %s26, 0
      %p47 = por %p45, %p46
      %p48 = scmp.ne.s32.totalorder %s34, %s35
      %p49 = scmp.eq.s32.totalorder %s27, 1
      %p50 = por %p48, %p49
      %p52 = scmp.ne.s32.totalorder %s35, %s51
      %p53 = scmp.eq.s32.totalorder %s27, 0
      %p54 = por %p52, %p53
      %s56 = sadd.s32 %s55, 1
      %p59 = scmp.eq.s32.totalorder %s21, 1
      %p60 = scmp.ne.s32.totalorder %s55, %s57
      %p61 = scmp.eq.s32.totalorder %s21, 0
      %p62 = por %p60, %p61
      %p63 = scmp.ne.s32.totalorder %s55, %s57
      %p64 = scmp.eq.s32.totalorder %s26, 1
      %p65 = por %p63, %p64
      %p66 = scmp.ne.s32.totalorder %s57, %s58
      %p67 = scmp.eq.s32.totalorder %s26, 0
      %p68 = por %p66, %p67
      %p69 = scmp.ne.s32.totalorder %s57, %s58
      %p70 = scmp.eq.s32.totalorder %s27, 1
      %p71 = por %p69, %p70
      %p73 = scmp.ne.s32.totalorder %s58, %s72
      %p74 = scmp.eq.s32.totalorder %s27, 0
      %p75 = por %p73, %p74
      %s77 = sadd.s32 %s76, 1
      %p80 = scmp.eq.s32.totalorder %s21, 1
      %p81 = scmp.ne.s32.totalorder %s76, %s78
      %p82 = scmp.eq.s32.totalorder %s21, 0
      %p83 = por %p81, %p82
      %p84 = scmp.ne.s32.totalorder %s76, %s78
      %p85 = scmp.eq.s32.totalorder %s26, 1
      %p86 = por %p84, %p85
      %p87 = scmp.ne.s32.totalorder %s78, %s79
      %p88 = scmp.eq.s32.totalorder %s26, 0
      %p89 = por %p87, %p88
      %p90 = scmp.ne.s32.totalorder %s78, %s79
      %p91 = scmp.eq.s32.totalorder %s27, 1
      %p92 = por %p90, %p91
      %p94 = scmp.ne.s32.totalorder %s79, %s93
      %p95 = scmp.eq.s32.totalorder %s27, 0
      %p96 = por %p94, %p95
      %s97 = ssub.s32 %s21, %s28
      %p98 = scmp.eq.s32.totalorder %s97, 0
      %s100 = sadd.s32 %s99, 1
      %s101 = scalar_select %p98, %s99, %s100
      %p104 = pneg %p98
      %p105 = scmp.eq.s32.totalorder %s21, 1
      %p106 = por %p104, %p105
      %p107 = scmp.ne.s32.totalorder %s99, %s102
      %p108 = scmp.eq.s32.totalorder %s21, 0
      %p109 = por %p107, %p108
      %p110 = scmp.ne.s32.totalorder %s99, %s102
      %p111 = scmp.eq.s32.totalorder %s26, 1
      %p112 = por %p110, %p111
      %p113 = scmp.ne.s32.totalorder %s102, %s103
      %p114 = scmp.eq.s32.totalorder %s26, 0
      %p115 = por %p113, %p114
      %p116 = scmp.ne.s32.totalorder %s102, %s103
      %p117 = scmp.eq.s32.totalorder %s27, 1
      %p118 = por %p116, %p117
      %p120 = scmp.ne.s32.totalorder %s103, %s119
      %p121 = scmp.eq.s32.totalorder %s27, 0
      %p122 = por %p120, %p121
      %s123 = ssub.s32 %s21, %s28
      %p124 = scmp.eq.s32.totalorder %s123, 0
      %s126 = sadd.s32 %s125, 1
      %s127 = scalar_select %p124, %s125, %s126
      %p130 = pneg %p124
      %p131 = scmp.eq.s32.totalorder %s21, 1
      %p132 = por %p130, %p131
      %p133 = scmp.ne.s32.totalorder %s125, %s128
      %p134 = scmp.eq.s32.totalorder %s21, 0
      %p135 = por %p133, %p134
      %p136 = scmp.ne.s32.totalorder %s125, %s128
      %p137 = scmp.eq.s32.totalorder %s26, 1
      %p138 = por %p136, %p137
      %p139 = scmp.ne.s32.totalorder %s128, %s129
      %p140 = scmp.eq.s32.totalorder %s26, 0
      %p141 = por %p139, %p140
      %p142 = scmp.ne.s32.totalorder %s128, %s129
      %p143 = scmp.eq.s32.totalorder %s27, 1
      %p144 = por %p142, %p143
      %p146 = scmp.ne.s32.totalorder %s129, %s145
      %p147 = scmp.eq.s32.totalorder %s27, 0
      %p148 = por %p146, %p147
      %p149 = scmp.le.s32.totalorder 1, %s21
      %p150 = scmp.lt.s32.totalorder %s21, 3
      %p151 = pnand %p149, %p150
      %p152 = pneg %p151
      // Predicated region
      $region9: #{tpu_custom_call.1} parent=5 // pred_check
        _
      $region10: #{tpu_custom_call.1} parent=5 // pred_check_branch
        %154 = sbr.rel (%p151) target = $region12
      $region11: #{tpu_custom_call.1} parent=5 // pred_region
        %s155 = ssub.s32 %s21, 1
        // Predicated region
        $region13: #{tpu_custom_call.1} parent=11 // pred_check
          %p156 = pneg %p68
        $region14: #{tpu_custom_call.1} parent=11 // pred_check_branch
          %158 = sbr.rel (%p156) target = $region16
        $region15: #{tpu_custom_call.1} parent=11 // pred_region
          %s160 = ssub.s32 2048, 2048
          %161 = vsyncadd [#allocation6], %s160
          %s162 = sshll.u32 [#allocation5], 4
          %s163 = int_to_ptr.vmem [resolvable:$true] %s162
          %168 = dma.hbm_to_vmem [thread:$0]  %s1, 2048, %s163, [#allocation6], 128, 128, 8
        $region16: #{tpu_custom_call.1} parent=11 // pred_fallthru
          _
        // Predicated region
        $region17: #{tpu_custom_call.1} parent=11 // pred_check
          %p169 = pneg %p89
        $region18: #{tpu_custom_call.1} parent=11 // pred_check_branch
          %171 = sbr.rel (%p169) target = $region20
        $region19: #{tpu_custom_call.1} parent=11 // pred_region
          %s173 = ssub.s32 16, 16
          %174 = vsyncadd [#allocation6], %s173
          %s176 = sshll.u32 [#allocation7], 4
          %s177 = int_to_ptr.vmem [resolvable:$true] %s176
          %179 = dma.hbm_to_vmem [thread:$0]  %s2, 16, %s177, [#allocation6]
        $region20: #{tpu_custom_call.1} parent=11 // pred_fallthru
          _
      $region12: #{tpu_custom_call.1} parent=5 // pred_fallthru
        _
      %p180 = scmp.lt.s32.totalorder %s21, 2
      // Predicated region
      $region21: #{tpu_custom_call.1} parent=5 // pred_check
        %p181 = pneg %p180
      $region22: #{tpu_custom_call.1} parent=5 // pred_check_branch
        %183 = sbr.rel (%p181) target = $region24
      $region23: #{tpu_custom_call.1} parent=5 // pred_region
        // Predicated region
        $region25: #{tpu_custom_call.1} parent=23 // pred_check
          %p184 = pneg %p41
        $region26: #{tpu_custom_call.1} parent=23 // pred_check_branch
          %186 = sbr.rel (%p184) target = $region28
        $region27: #{tpu_custom_call.1} parent=23 // pred_region
          %s187 = sand.u32 %s31, 1
          %s188 = scalar_lea.sflag [#allocation3], %s187
          %s189 = sand.u32 %s31, 1
          %s190 = smul.addr %s189, 2048
          %s191 = scalar_lea.vmem [#allocation2], %s190
          %s192 = smul.u32 8, %s21
          %s194 = ssub.s32 32768, 32768
          %195 = vsyncadd %s188, %s194
          %s196 = smul.addr %s192, 32
          %s197 = smul.addr %s196, 128
          %s198 = scalar_lea.hbm %s0, %s197
          %s199 = sshll.u32 %s191, 4
          %s200 = int_to_ptr.vmem [resolvable:$true] %s199
          %205 = dma.hbm_to_vmem [thread:$0]  %s198, 32768, %s200, %s188, 256, 256, 16
        $region28: #{tpu_custom_call.1} parent=23 // pred_fallthru
          _
      $region24: #{tpu_custom_call.1} parent=5 // pred_fallthru
        _
      %p206 = scmp.le.s32.totalorder 1, %s21
      %p207 = scmp.lt.s32.totalorder %s21, 3
      %p208 = pnand %p206, %p207
      %p209 = pneg %p208
      // Predicated region
      $region29: #{tpu_custom_call.1} parent=5 // pred_check
        _
      $region30: #{tpu_custom_call.1} parent=5 // pred_check_branch
        %211 = sbr.rel (%p208) target = $region32
      $region31: #{tpu_custom_call.1} parent=5 // pred_region
        %s212 = ssub.s32 %s21, 1
        %s213 = sand.u32 %s34, 1
        %s214 = scalar_lea.sflag [#allocation3], %s213
        %s215 = sand.u32 %s34, 1
        %s216 = smul.addr %s215, 2048
        %s217 = scalar_lea.vmem [#allocation2], %s216
        // Predicated region
        $region33: #{tpu_custom_call.1} parent=31 // pred_check
          %p218 = pneg %p47
        $region34: #{tpu_custom_call.1} parent=31 // pred_check_branch
          %220 = sbr.rel (%p218) target = $region36
        $region35: #{tpu_custom_call.1} parent=31 // pred_region
          %221 = dma.done %s214, 32768
        $region36: #{tpu_custom_call.1} parent=31 // pred_fallthru
          _
        // Predicated region
        $region37: #{tpu_custom_call.1} parent=31 // pred_check
          %p222 = pneg %p68
        $region38: #{tpu_custom_call.1} parent=31 // pred_check_branch
          %224 = sbr.rel (%p222) target = $region40
        $region39: #{tpu_custom_call.1} parent=31 // pred_region
          %225 = dma.done [#allocation6], 2048
        $region40: #{tpu_custom_call.1} parent=31 // pred_fallthru
          _
        // Predicated region
        $region41: #{tpu_custom_call.1} parent=31 // pred_check
          %p226 = pneg %p89
        $region42: #{tpu_custom_call.1} parent=31 // pred_check_branch
          %228 = sbr.rel (%p226) target = $region44
        $region43: #{tpu_custom_call.1} parent=31 // pred_region
          %229 = dma.done [#allocation6], 16
        $region44: #{tpu_custom_call.1} parent=31 // pred_fallthru
          _
        %s230 = sand.u32 %s34, 1
        %s231 = scalar_lea.sflag [#allocation3], %s230
        %s232 = sand.u32 %s34, 1
        %s233 = smul.addr %s232, 2048
        %s234 = scalar_lea.vmem [#allocation2], %s233
        %p235 = pneg %p47
        %p236 = pneg %p44
        %p237 = pneg %p68
        %p238 = pneg %p65
        %p239 = pneg %p89
        %p240 = pneg %p86
        %p241 = pneg %p115
        %p242 = pneg %p112
        %s243 = sand.u32 %s102, 1
        %s244 = scalar_lea.sflag [#allocation4], %s243
        %s245 = sand.u32 %s102, 1
        %s246 = smul.addr %s245, 2048
        %s247 = scalar_lea.vmem [#allocation8], %s246
        %p248 = pneg %p141
        %p249 = pneg %p138
        %s250 = sand.u32 %s128, 1
        %s251 = scalar_lea.sflag [#allocation10], %s250
        %s252 = sand.u32 %s128, 1
        %s253 = smul.addr %s252, 8
        %s254 = scalar_lea.vmem [#allocation9], %s253
        %s255 = smul.u32 8, %s26
        %s256 = smul.u32 8, %s26
        %v257 = vld [vmem:[%s217] sm:$0xff]
        %v258 = vld [vmem:[%s217 + $0x8] sm:$0xff]
        %v259 = vld [vmem:[%s217 + $0x10] sm:$0xff]
        %v260 = vld [vmem:[%s217 + $0x18] sm:$0xff]
        %v261 = vld [vmem:[%s217 + $0x20] sm:$0xff]
        %v262 = vld [vmem:[%s217 + $0x28] sm:$0xff]
        %v263 = vld [vmem:[%s217 + $0x30] sm:$0xff]
        %v264 = vld [vmem:[%s217 + $0x38] sm:$0xff]
        %v265 = vld [vmem:[%s217 + $0x40] sm:$0xff]
        %v266 = vld [vmem:[%s217 + $0x48] sm:$0xff]
        %v267 = vld [vmem:[%s217 + $0x50] sm:$0xff]
        %v268 = vld [vmem:[%s217 + $0x58] sm:$0xff]
        %v269 = vld [vmem:[%s217 + $0x60] sm:$0xff]
        %v270 = vld [vmem:[%s217 + $0x68] sm:$0xff]
        %v271 = vld [vmem:[%s217 + $0x70] sm:$0xff]
        %v272 = vld [vmem:[%s217 + $0x78] sm:$0xff]
        %v273 = vld [vmem:[%s217 + $0x80] sm:$0xff]
        %v274 = vld [vmem:[%s217 + $0x88] sm:$0xff]
        %v275 = vld [vmem:[%s217 + $0x90] sm:$0xff]
        %v276 = vld [vmem:[%s217 + $0x98] sm:$0xff]
        %v277 = vld [vmem:[%s217 + $0xa0] sm:$0xff]
        %v278 = vld [vmem:[%s217 + $0xa8] sm:$0xff]
        %v279 = vld [vmem:[%s217 + $0xb0] sm:$0xff]
        %v280 = vld [vmem:[%s217 + $0xb8] sm:$0xff]
        %v281 = vld [vmem:[%s217 + $0xc0] sm:$0xff]
        %v282 = vld [vmem:[%s217 + $0xc8] sm:$0xff]
        %v283 = vld [vmem:[%s217 + $0xd0] sm:$0xff]
        %v284 = vld [vmem:[%s217 + $0xd8] sm:$0xff]
        %v285 = vld [vmem:[%s217 + $0xe0] sm:$0xff]
        %v286 = vld [vmem:[%s217 + $0xe8] sm:$0xff]
        %v287 = vld [vmem:[%s217 + $0xf0] sm:$0xff]
        %v288 = vld [vmem:[%s217 + $0xf8] sm:$0xff]
        %v289 = vld [vmem:[%s217 + $0x100] sm:$0xff]
        %v290 = vld [vmem:[%s217 + $0x108] sm:$0xff]
        %v291 = vld [vmem:[%s217 + $0x110] sm:$0xff]
        %v292 = vld [vmem:[%s217 + $0x118] sm:$0xff]
        %v293 = vld [vmem:[%s217 + $0x120] sm:$0xff]
        %v294 = vld [vmem:[%s217 + $0x128] sm:$0xff]
        %v295 = vld [vmem:[%s217 + $0x130] sm:$0xff]
        %v296 = vld [vmem:[%s217 + $0x138] sm:$0xff]
        %v297 = vld [vmem:[%s217 + $0x140] sm:$0xff]
        %v298 = vld [vmem:[%s217 + $0x148] sm:$0xff]
        %v299 = vld [vmem:[%s217 + $0x150] sm:$0xff]
        %v300 = vld [vmem:[%s217 + $0x158] sm:$0xff]
        %v301 = vld [vmem:[%s217 + $0x160] sm:$0xff]
        %v302 = vld [vmem:[%s217 + $0x168] sm:$0xff]
        %v303 = vld [vmem:[%s217 + $0x170] sm:$0xff]
        %v304 = vld [vmem:[%s217 + $0x178] sm:$0xff]
        %v305 = vld [vmem:[%s217 + $0x180] sm:$0xff]
        %v306 = vld [vmem:[%s217 + $0x188] sm:$0xff]
        %v307 = vld [vmem:[%s217 + $0x190] sm:$0xff]
        %v308 = vld [vmem:[%s217 + $0x198] sm:$0xff]
        %v309 = vld [vmem:[%s217 + $0x1a0] sm:$0xff]
        %v310 = vld [vmem:[%s217 + $0x1a8] sm:$0xff]
        %v311 = vld [vmem:[%s217 + $0x1b0] sm:$0xff]
        %v312 = vld [vmem:[%s217 + $0x1b8] sm:$0xff]
        %v313 = vld [vmem:[%s217 + $0x1c0] sm:$0xff]
        %v314 = vld [vmem:[%s217 + $0x1c8] sm:$0xff]
        %v315 = vld [vmem:[%s217 + $0x1d0] sm:$0xff]
        %v316 = vld [vmem:[%s217 + $0x1d8] sm:$0xff]
        %v317 = vld [vmem:[%s217 + $0x1e0] sm:$0xff]
        %v318 = vld [vmem:[%s217 + $0x1e8] sm:$0xff]
        %v319 = vld [vmem:[%s217 + $0x1f0] sm:$0xff]
        %v320 = vld [vmem:[%s217 + $0x1f8] sm:$0xff]
        %v321 = vld [vmem:[%s217 + $0x200] sm:$0xff]
        %v322 = vld [vmem:[%s217 + $0x208] sm:$0xff]
        %v323 = vld [vmem:[%s217 + $0x210] sm:$0xff]
        %v324 = vld [vmem:[%s217 + $0x218] sm:$0xff]
        %v325 = vld [vmem:[%s217 + $0x220] sm:$0xff]
        %v326 = vld [vmem:[%s217 + $0x228] sm:$0xff]
        %v327 = vld [vmem:[%s217 + $0x230] sm:$0xff]
        %v328 = vld [vmem:[%s217 + $0x238] sm:$0xff]
        %v329 = vld [vmem:[%s217 + $0x240] sm:$0xff]
        %v330 = vld [vmem:[%s217 + $0x248] sm:$0xff]
        %v331 = vld [vmem:[%s217 + $0x250] sm:$0xff]
        %v332 = vld [vmem:[%s217 + $0x258] sm:$0xff]
        %v333 = vld [vmem:[%s217 + $0x260] sm:$0xff]
        %v334 = vld [vmem:[%s217 + $0x268] sm:$0xff]
        %v335 = vld [vmem:[%s217 + $0x270] sm:$0xff]
        %v336 = vld [vmem:[%s217 + $0x278] sm:$0xff]
        %v337 = vld [vmem:[%s217 + $0x280] sm:$0xff]
        %v338 = vld [vmem:[%s217 + $0x288] sm:$0xff]
        %v339 = vld [vmem:[%s217 + $0x290] sm:$0xff]
        %v340 = vld [vmem:[%s217 + $0x298] sm:$0xff]
        %v341 = vld [vmem:[%s217 + $0x2a0] sm:$0xff]
        %v342 = vld [vmem:[%s217 + $0x2a8] sm:$0xff]
        %v343 = vld [vmem:[%s217 + $0x2b0] sm:$0xff]
        %v344 = vld [vmem:[%s217 + $0x2b8] sm:$0xff]
        %v345 = vld [vmem:[%s217 + $0x2c0] sm:$0xff]
        %v346 = vld [vmem:[%s217 + $0x2c8] sm:$0xff]
        %v347 = vld [vmem:[%s217 + $0x2d0] sm:$0xff]
        %v348 = vld [vmem:[%s217 + $0x2d8] sm:$0xff]
        %v349 = vld [vmem:[%s217 + $0x2e0] sm:$0xff]
        %v350 = vld [vmem:[%s217 + $0x2e8] sm:$0xff]
        %v351 = vld [vmem:[%s217 + $0x2f0] sm:$0xff]
        %v352 = vld [vmem:[%s217 + $0x2f8] sm:$0xff]
        %v353 = vld [vmem:[%s217 + $0x300] sm:$0xff]
        %v354 = vld [vmem:[%s217 + $0x308] sm:$0xff]
        %v355 = vld [vmem:[%s217 + $0x310] sm:$0xff]
        %v356 = vld [vmem:[%s217 + $0x318] sm:$0xff]
        %v357 = vld [vmem:[%s217 + $0x320] sm:$0xff]
        %v358 = vld [vmem:[%s217 + $0x328] sm:$0xff]
        %v359 = vld [vmem:[%s217 + $0x330] sm:$0xff]
        %v360 = vld [vmem:[%s217 + $0x338] sm:$0xff]
        %v361 = vld [vmem:[%s217 + $0x340] sm:$0xff]
        %v362 = vld [vmem:[%s217 + $0x348] sm:$0xff]
        %v363 = vld [vmem:[%s217 + $0x350] sm:$0xff]
        %v364 = vld [vmem:[%s217 + $0x358] sm:$0xff]
        %v365 = vld [vmem:[%s217 + $0x360] sm:$0xff]
        %v366 = vld [vmem:[%s217 + $0x368] sm:$0xff]
        %v367 = vld [vmem:[%s217 + $0x370] sm:$0xff]
        %v368 = vld [vmem:[%s217 + $0x378] sm:$0xff]
        %v369 = vld [vmem:[%s217 + $0x380] sm:$0xff]
        %v370 = vld [vmem:[%s217 + $0x388] sm:$0xff]
        %v371 = vld [vmem:[%s217 + $0x390] sm:$0xff]
        %v372 = vld [vmem:[%s217 + $0x398] sm:$0xff]
        %v373 = vld [vmem:[%s217 + $0x3a0] sm:$0xff]
        %v374 = vld [vmem:[%s217 + $0x3a8] sm:$0xff]
        %v375 = vld [vmem:[%s217 + $0x3b0] sm:$0xff]
        %v376 = vld [vmem:[%s217 + $0x3b8] sm:$0xff]
        %v377 = vld [vmem:[%s217 + $0x3c0] sm:$0xff]
        %v378 = vld [vmem:[%s217 + $0x3c8] sm:$0xff]
        %v379 = vld [vmem:[%s217 + $0x3d0] sm:$0xff]
        %v380 = vld [vmem:[%s217 + $0x3d8] sm:$0xff]
        %v381 = vld [vmem:[%s217 + $0x3e0] sm:$0xff]
        %v382 = vld [vmem:[%s217 + $0x3e8] sm:$0xff]
        %v383 = vld [vmem:[%s217 + $0x3f0] sm:$0xff]
        %v384 = vld [vmem:[%s217 + $0x3f8] sm:$0xff]
        %v385 = vld [vmem:[%s217 + $0x400] sm:$0xff]
        %v386 = vld [vmem:[%s217 + $0x408] sm:$0xff]
        %v387 = vld [vmem:[%s217 + $0x410] sm:$0xff]
        %v388 = vld [vmem:[%s217 + $0x418] sm:$0xff]
        %v389 = vld [vmem:[%s217 + $0x420] sm:$0xff]
        %v390 = vld [vmem:[%s217 + $0x428] sm:$0xff]
        %v391 = vld [vmem:[%s217 + $0x430] sm:$0xff]
        %v392 = vld [vmem:[%s217 + $0x438] sm:$0xff]
        %v393 = vld [vmem:[%s217 + $0x440] sm:$0xff]
        %v394 = vld [vmem:[%s217 + $0x448] sm:$0xff]
        %v395 = vld [vmem:[%s217 + $0x450] sm:$0xff]
        %v396 = vld [vmem:[%s217 + $0x458] sm:$0xff]
        %v397 = vld [vmem:[%s217 + $0x460] sm:$0xff]
        %v398 = vld [vmem:[%s217 + $0x468] sm:$0xff]
        %v399 = vld [vmem:[%s217 + $0x470] sm:$0xff]
        %v400 = vld [vmem:[%s217 + $0x478] sm:$0xff]
        %v401 = vld [vmem:[%s217 + $0x480] sm:$0xff]
        %v402 = vld [vmem:[%s217 + $0x488] sm:$0xff]
        %v403 = vld [vmem:[%s217 + $0x490] sm:$0xff]
        %v404 = vld [vmem:[%s217 + $0x498] sm:$0xff]
        %v405 = vld [vmem:[%s217 + $0x4a0] sm:$0xff]
        %v406 = vld [vmem:[%s217 + $0x4a8] sm:$0xff]
        %v407 = vld [vmem:[%s217 + $0x4b0] sm:$0xff]
        %v408 = vld [vmem:[%s217 + $0x4b8] sm:$0xff]
        %v409 = vld [vmem:[%s217 + $0x4c0] sm:$0xff]
        %v410 = vld [vmem:[%s217 + $0x4c8] sm:$0xff]
        %v411 = vld [vmem:[%s217 + $0x4d0] sm:$0xff]
        %v412 = vld [vmem:[%s217 + $0x4d8] sm:$0xff]
        %v413 = vld [vmem:[%s217 + $0x4e0] sm:$0xff]
        %v414 = vld [vmem:[%s217 + $0x4e8] sm:$0xff]
        %v415 = vld [vmem:[%s217 + $0x4f0] sm:$0xff]
        %v416 = vld [vmem:[%s217 + $0x4f8] sm:$0xff]
        %v417 = vld [vmem:[%s217 + $0x500] sm:$0xff]
        %v418 = vld [vmem:[%s217 + $0x508] sm:$0xff]
        %v419 = vld [vmem:[%s217 + $0x510] sm:$0xff]
        %v420 = vld [vmem:[%s217 + $0x518] sm:$0xff]
        %v421 = vld [vmem:[%s217 + $0x520] sm:$0xff]
        %v422 = vld [vmem:[%s217 + $0x528] sm:$0xff]
        %v423 = vld [vmem:[%s217 + $0x530] sm:$0xff]
        %v424 = vld [vmem:[%s217 + $0x538] sm:$0xff]
        %v425 = vld [vmem:[%s217 + $0x540] sm:$0xff]
        %v426 = vld [vmem:[%s217 + $0x548] sm:$0xff]
        %v427 = vld [vmem:[%s217 + $0x550] sm:$0xff]
        %v428 = vld [vmem:[%s217 + $0x558] sm:$0xff]
        %v429 = vld [vmem:[%s217 + $0x560] sm:$0xff]
        %v430 = vld [vmem:[%s217 + $0x568] sm:$0xff]
        %v431 = vld [vmem:[%s217 + $0x570] sm:$0xff]
        %v432 = vld [vmem:[%s217 + $0x578] sm:$0xff]
        %v433 = vld [vmem:[%s217 + $0x580] sm:$0xff]
        %v434 = vld [vmem:[%s217 + $0x588] sm:$0xff]
        %v435 = vld [vmem:[%s217 + $0x590] sm:$0xff]
        %v436 = vld [vmem:[%s217 + $0x598] sm:$0xff]
        %v437 = vld [vmem:[%s217 + $0x5a0] sm:$0xff]
        %v438 = vld [vmem:[%s217 + $0x5a8] sm:$0xff]
        %v439 = vld [vmem:[%s217 + $0x5b0] sm:$0xff]
        %v440 = vld [vmem:[%s217 + $0x5b8] sm:$0xff]
        %v441 = vld [vmem:[%s217 + $0x5c0] sm:$0xff]
        %v442 = vld [vmem:[%s217 + $0x5c8] sm:$0xff]
        %v443 = vld [vmem:[%s217 + $0x5d0] sm:$0xff]
        %v444 = vld [vmem:[%s217 + $0x5d8] sm:$0xff]
        %v445 = vld [vmem:[%s217 + $0x5e0] sm:$0xff]
        %v446 = vld [vmem:[%s217 + $0x5e8] sm:$0xff]
        %v447 = vld [vmem:[%s217 + $0x5f0] sm:$0xff]
        %v448 = vld [vmem:[%s217 + $0x5f8] sm:$0xff]
        %v449 = vld [vmem:[%s217 + $0x600] sm:$0xff]
        %v450 = vld [vmem:[%s217 + $0x608] sm:$0xff]
        %v451 = vld [vmem:[%s217 + $0x610] sm:$0xff]
        %v452 = vld [vmem:[%s217 + $0x618] sm:$0xff]
        %v453 = vld [vmem:[%s217 + $0x620] sm:$0xff]
        %v454 = vld [vmem:[%s217 + $0x628] sm:$0xff]
        %v455 = vld [vmem:[%s217 + $0x630] sm:$0xff]
        %v456 = vld [vmem:[%s217 + $0x638] sm:$0xff]
        %v457 = vld [vmem:[%s217 + $0x640] sm:$0xff]
        %v458 = vld [vmem:[%s217 + $0x648] sm:$0xff]
        %v459 = vld [vmem:[%s217 + $0x650] sm:$0xff]
        %v460 = vld [vmem:[%s217 + $0x658] sm:$0xff]
        %v461 = vld [vmem:[%s217 + $0x660] sm:$0xff]
        %v462 = vld [vmem:[%s217 + $0x668] sm:$0xff]
        %v463 = vld [vmem:[%s217 + $0x670] sm:$0xff]
        %v464 = vld [vmem:[%s217 + $0x678] sm:$0xff]
        %v465 = vld [vmem:[%s217 + $0x680] sm:$0xff]
        %v466 = vld [vmem:[%s217 + $0x688] sm:$0xff]
        %v467 = vld [vmem:[%s217 + $0x690] sm:$0xff]
        %v468 = vld [vmem:[%s217 + $0x698] sm:$0xff]
        %v469 = vld [vmem:[%s217 + $0x6a0] sm:$0xff]
        %v470 = vld [vmem:[%s217 + $0x6a8] sm:$0xff]
        %v471 = vld [vmem:[%s217 + $0x6b0] sm:$0xff]
        %v472 = vld [vmem:[%s217 + $0x6b8] sm:$0xff]
        %v473 = vld [vmem:[%s217 + $0x6c0] sm:$0xff]
        %v474 = vld [vmem:[%s217 + $0x6c8] sm:$0xff]
        %v475 = vld [vmem:[%s217 + $0x6d0] sm:$0xff]
        %v476 = vld [vmem:[%s217 + $0x6d8] sm:$0xff]
        %v477 = vld [vmem:[%s217 + $0x6e0] sm:$0xff]
        %v478 = vld [vmem:[%s217 + $0x6e8] sm:$0xff]
        %v479 = vld [vmem:[%s217 + $0x6f0] sm:$0xff]
        %v480 = vld [vmem:[%s217 + $0x6f8] sm:$0xff]
        %v481 = vld [vmem:[%s217 + $0x700] sm:$0xff]
        %v482 = vld [vmem:[%s217 + $0x708] sm:$0xff]
        %v483 = vld [vmem:[%s217 + $0x710] sm:$0xff]
        %v484 = vld [vmem:[%s217 + $0x718] sm:$0xff]
        %v485 = vld [vmem:[%s217 + $0x720] sm:$0xff]
        %v486 = vld [vmem:[%s217 + $0x728] sm:$0xff]
        %v487 = vld [vmem:[%s217 + $0x730] sm:$0xff]
        %v488 = vld [vmem:[%s217 + $0x738] sm:$0xff]
        %v489 = vld [vmem:[%s217 + $0x740] sm:$0xff]
        %v490 = vld [vmem:[%s217 + $0x748] sm:$0xff]
        %v491 = vld [vmem:[%s217 + $0x750] sm:$0xff]
        %v492 = vld [vmem:[%s217 + $0x758] sm:$0xff]
        %v493 = vld [vmem:[%s217 + $0x760] sm:$0xff]
        %v494 = vld [vmem:[%s217 + $0x768] sm:$0xff]
        %v495 = vld [vmem:[%s217 + $0x770] sm:$0xff]
        %v496 = vld [vmem:[%s217 + $0x778] sm:$0xff]
        %v497 = vld [vmem:[%s217 + $0x780] sm:$0xff]
        %v498 = vld [vmem:[%s217 + $0x788] sm:$0xff]
        %v499 = vld [vmem:[%s217 + $0x790] sm:$0xff]
        %v500 = vld [vmem:[%s217 + $0x798] sm:$0xff]
        %v501 = vld [vmem:[%s217 + $0x7a0] sm:$0xff]
        %v502 = vld [vmem:[%s217 + $0x7a8] sm:$0xff]
        %v503 = vld [vmem:[%s217 + $0x7b0] sm:$0xff]
        %v504 = vld [vmem:[%s217 + $0x7b8] sm:$0xff]
        %v505 = vld [vmem:[%s217 + $0x7c0] sm:$0xff]
        %v506 = vld [vmem:[%s217 + $0x7c8] sm:$0xff]
        %v507 = vld [vmem:[%s217 + $0x7d0] sm:$0xff]
        %v508 = vld [vmem:[%s217 + $0x7d8] sm:$0xff]
        %v509 = vld [vmem:[%s217 + $0x7e0] sm:$0xff]
        %v510 = vld [vmem:[%s217 + $0x7e8] sm:$0xff]
        %v511 = vld [vmem:[%s217 + $0x7f0] sm:$0xff]
        %v512 = vld [vmem:[%s217 + $0x7f8] sm:$0xff]
        %v513 = vld [vmem:[#allocation5] sm:$0xff]
        %v514 = vld [vmem:[#allocation5 + $0x8] sm:$0xff]
        %v515 = vld [vmem:[#allocation5 + $0x10] sm:$0xff]
        %v516 = vld [vmem:[#allocation5 + $0x18] sm:$0xff]
        %v517 = vld [vmem:[#allocation5 + $0x20] sm:$0xff]
        %v518 = vld [vmem:[#allocation5 + $0x28] sm:$0xff]
        %v519 = vld [vmem:[#allocation5 + $0x30] sm:$0xff]
        %v520 = vld [vmem:[#allocation5 + $0x38] sm:$0xff]
        %v521 = vld [vmem:[#allocation5 + $0x40] sm:$0xff]
        %v522 = vld [vmem:[#allocation5 + $0x48] sm:$0xff]
        %v523 = vld [vmem:[#allocation5 + $0x50] sm:$0xff]
        %v524 = vld [vmem:[#allocation5 + $0x58] sm:$0xff]
        %v525 = vld [vmem:[#allocation5 + $0x60] sm:$0xff]
        %v526 = vld [vmem:[#allocation5 + $0x68] sm:$0xff]
        %v527 = vld [vmem:[#allocation5 + $0x70] sm:$0xff]
        %v528 = vld [vmem:[#allocation5 + $0x78] sm:$0xff]
        %v529 = vld [vmem:[#allocation7] sm:$0x1]
        %530 = vxpose.xlu0.b32.start [1/16] %v257, 128
        %531 = vxpose.xlu0.b32.cont [2/16] %v259, 128
        %532 = vxpose.xlu0.b32.cont [3/16] %v261, 128
        %533 = vxpose.xlu0.b32.cont [4/16] %v263, 128
        %534 = vxpose.xlu0.b32.cont [5/16] %v265, 128
        %535 = vxpose.xlu0.b32.cont [6/16] %v267, 128
        %536 = vxpose.xlu0.b32.cont [7/16] %v269, 128
        %537 = vxpose.xlu0.b32.cont [8/16] %v271, 128
        %538 = vxpose.xlu0.b32.cont [9/16] %v273, 128
        %539 = vxpose.xlu0.b32.cont [10/16] %v275, 128
        %540 = vxpose.xlu0.b32.cont [11/16] %v277, 128
        %541 = vxpose.xlu0.b32.cont [12/16] %v279, 128
        %542 = vxpose.xlu0.b32.cont [13/16] %v281, 128
        %543 = vxpose.xlu0.b32.cont [14/16] %v283, 128
        %544 = vxpose.xlu0.b32.cont [15/16] %v285, 128
        %545 = vxpose.xlu0.b32.end [16/16] %v287, 128
        %v546 = vpop.trf.xlu0
        %v547 = vpop.trf.xlu0
        %v548 = vpop.trf.xlu0
        %v549 = vpop.trf.xlu0
        %v550 = vpop.trf.xlu0
        %v551 = vpop.trf.xlu0
        %v552 = vpop.trf.xlu0
        %v553 = vpop.trf.xlu0
        %v554 = vpop.trf.xlu0
        %v555 = vpop.trf.xlu0
        %v556 = vpop.trf.xlu0
        %v557 = vpop.trf.xlu0
        %v558 = vpop.trf.xlu0
        %v559 = vpop.trf.xlu0
        %v560 = vpop.trf.xlu0
        %v561 = vpop.trf.xlu0
        %562 = vxpose.xlu0.b32.start [1/16] %v258, 128
        %563 = vxpose.xlu0.b32.cont [2/16] %v260, 128
        %564 = vxpose.xlu0.b32.cont [3/16] %v262, 128
        %565 = vxpose.xlu0.b32.cont [4/16] %v264, 128
        %566 = vxpose.xlu0.b32.cont [5/16] %v266, 128
        %567 = vxpose.xlu0.b32.cont [6/16] %v268, 128
        %568 = vxpose.xlu0.b32.cont [7/16] %v270, 128
        %569 = vxpose.xlu0.b32.cont [8/16] %v272, 128
        %570 = vxpose.xlu0.b32.cont [9/16] %v274, 128
        %571 = vxpose.xlu0.b32.cont [10/16] %v276, 128
        %572 = vxpose.xlu0.b32.cont [11/16] %v278, 128
        %573 = vxpose.xlu0.b32.cont [12/16] %v280, 128
        %574 = vxpose.xlu0.b32.cont [13/16] %v282, 128
        %575 = vxpose.xlu0.b32.cont [14/16] %v284, 128
        %576 = vxpose.xlu0.b32.cont [15/16] %v286, 128
        %577 = vxpose.xlu0.b32.end [16/16] %v288, 128
        %v578 = vpop.trf.xlu0
        %v579 = vpop.trf.xlu0
        %v580 = vpop.trf.xlu0
        %v581 = vpop.trf.xlu0
        %v582 = vpop.trf.xlu0
        %v583 = vpop.trf.xlu0
        %v584 = vpop.trf.xlu0
        %v585 = vpop.trf.xlu0
        %v586 = vpop.trf.xlu0
        %v587 = vpop.trf.xlu0
        %v588 = vpop.trf.xlu0
        %v589 = vpop.trf.xlu0
        %v590 = vpop.trf.xlu0
        %v591 = vpop.trf.xlu0
        %v592 = vpop.trf.xlu0
        %v593 = vpop.trf.xlu0
        %594 = vxpose.xlu0.b32.start [1/16] %v289, 128
        %595 = vxpose.xlu0.b32.cont [2/16] %v291, 128
        %596 = vxpose.xlu0.b32.cont [3/16] %v293, 128
        %597 = vxpose.xlu0.b32.cont [4/16] %v295, 128
        %598 = vxpose.xlu0.b32.cont [5/16] %v297, 128
        %599 = vxpose.xlu0.b32.cont [6/16] %v299, 128
        %600 = vxpose.xlu0.b32.cont [7/16] %v301, 128
        %601 = vxpose.xlu0.b32.cont [8/16] %v303, 128
        %602 = vxpose.xlu0.b32.cont [9/16] %v305, 128
        %603 = vxpose.xlu0.b32.cont [10/16] %v307, 128
        %604 = vxpose.xlu0.b32.cont [11/16] %v309, 128
        %605 = vxpose.xlu0.b32.cont [12/16] %v311, 128
        %606 = vxpose.xlu0.b32.cont [13/16] %v313, 128
        %607 = vxpose.xlu0.b32.cont [14/16] %v315, 128
        %608 = vxpose.xlu0.b32.cont [15/16] %v317, 128
        %609 = vxpose.xlu0.b32.end [16/16] %v319, 128
        %v610 = vpop.trf.xlu0
        %v611 = vpop.trf.xlu0
        %v612 = vpop.trf.xlu0
        %v613 = vpop.trf.xlu0
        %v614 = vpop.trf.xlu0
        %v615 = vpop.trf.xlu0
        %v616 = vpop.trf.xlu0
        %v617 = vpop.trf.xlu0
        %v618 = vpop.trf.xlu0
        %v619 = vpop.trf.xlu0
        %v620 = vpop.trf.xlu0
        %v621 = vpop.trf.xlu0
        %v622 = vpop.trf.xlu0
        %v623 = vpop.trf.xlu0
        %v624 = vpop.trf.xlu0
        %v625 = vpop.trf.xlu0
        %626 = vxpose.xlu0.b32.start [1/16] %v290, 128
        %627 = vxpose.xlu0.b32.cont [2/16] %v292, 128
        %628 = vxpose.xlu0.b32.cont [3/16] %v294, 128
        %629 = vxpose.xlu0.b32.cont [4/16] %v296, 128
        %630 = vxpose.xlu0.b32.cont [5/16] %v298, 128
        %631 = vxpose.xlu0.b32.cont [6/16] %v300, 128
        %632 = vxpose.xlu0.b32.cont [7/16] %v302, 128
        %633 = vxpose.xlu0.b32.cont [8/16] %v304, 128
        %634 = vxpose.xlu0.b32.cont [9/16] %v306, 128
        %635 = vxpose.xlu0.b32.cont [10/16] %v308, 128
        %636 = vxpose.xlu0.b32.cont [11/16] %v310, 128
        %637 = vxpose.xlu0.b32.cont [12/16] %v312, 128
        %638 = vxpose.xlu0.b32.cont [13/16] %v314, 128
        %639 = vxpose.xlu0.b32.cont [14/16] %v316, 128
        %640 = vxpose.xlu0.b32.cont [15/16] %v318, 128
        %641 = vxpose.xlu0.b32.end [16/16] %v320, 128
        %v642 = vpop.trf.xlu0
        %v643 = vpop.trf.xlu0
        %v644 = vpop.trf.xlu0
        %v645 = vpop.trf.xlu0
        %v646 = vpop.trf.xlu0
        %v647 = vpop.trf.xlu0
        %v648 = vpop.trf.xlu0
        %v649 = vpop.trf.xlu0
        %v650 = vpop.trf.xlu0
        %v651 = vpop.trf.xlu0
        %v652 = vpop.trf.xlu0
        %v653 = vpop.trf.xlu0
        %v654 = vpop.trf.xlu0
        %v655 = vpop.trf.xlu0
        %v656 = vpop.trf.xlu0
        %v657 = vpop.trf.xlu0
        %658 = vxpose.xlu0.b32.start [1/16] %v321, 128
        %659 = vxpose.xlu0.b32.cont [2/16] %v323, 128
        %660 = vxpose.xlu0.b32.cont [3/16] %v325, 128
        %661 = vxpose.xlu0.b32.cont [4/16] %v327, 128
        %662 = vxpose.xlu0.b32.cont [5/16] %v329, 128
        %663 = vxpose.xlu0.b32.cont [6/16] %v331, 128
        %664 = vxpose.xlu0.b32.cont [7/16] %v333, 128
        %665 = vxpose.xlu0.b32.cont [8/16] %v335, 128
        %666 = vxpose.xlu0.b32.cont [9/16] %v337, 128
        %667 = vxpose.xlu0.b32.cont [10/16] %v339, 128
        %668 = vxpose.xlu0.b32.cont [11/16] %v341, 128
        %669 = vxpose.xlu0.b32.cont [12/16] %v343, 128
        %670 = vxpose.xlu0.b32.cont [13/16] %v345, 128
        %671 = vxpose.xlu0.b32.cont [14/16] %v347, 128
        %672 = vxpose.xlu0.b32.cont [15/16] %v349, 128
        %673 = vxpose.xlu0.b32.end [16/16] %v351, 128
        %v674 = vpop.trf.xlu0
        %v675 = vpop.trf.xlu0
        %v676 = vpop.trf.xlu0
        %v677 = vpop.trf.xlu0
        %v678 = vpop.trf.xlu0
        %v679 = vpop.trf.xlu0
        %v680 = vpop.trf.xlu0
        %v681 = vpop.trf.xlu0
        %v682 = vpop.trf.xlu0
        %v683 = vpop.trf.xlu0
        %v684 = vpop.trf.xlu0
        %v685 = vpop.trf.xlu0
        %v686 = vpop.trf.xlu0
        %v687 = vpop.trf.xlu0
        %v688 = vpop.trf.xlu0
        %v689 = vpop.trf.xlu0
        %690 = vxpose.xlu0.b32.start [1/16] %v322, 128
        %691 = vxpose.xlu0.b32.cont [2/16] %v324, 128
        %692 = vxpose.xlu0.b32.cont [3/16] %v326, 128
        %693 = vxpose.xlu0.b32.cont [4/16] %v328, 128
        %694 = vxpose.xlu0.b32.cont [5/16] %v330, 128
        %695 = vxpose.xlu0.b32.cont [6/16] %v332, 128
        %696 = vxpose.xlu0.b32.cont [7/16] %v334, 128
        %697 = vxpose.xlu0.b32.cont [8/16] %v336, 128
        %698 = vxpose.xlu0.b32.cont [9/16] %v338, 128
        %699 = vxpose.xlu0.b32.cont [10/16] %v340, 128
        %700 = vxpose.xlu0.b32.cont [11/16] %v342, 128
        %701 = vxpose.xlu0.b32.cont [12/16] %v344, 128
        %702 = vxpose.xlu0.b32.cont [13/16] %v346, 128
        %703 = vxpose.xlu0.b32.cont [14/16] %v348, 128
        %704 = vxpose.xlu0.b32.cont [15/16] %v350, 128
        %705 = vxpose.xlu0.b32.end [16/16] %v352, 128
        %v706 = vpop.trf.xlu0
        %v707 = vpop.trf.xlu0
        %v708 = vpop.trf.xlu0
        %v709 = vpop.trf.xlu0
        %v710 = vpop.trf.xlu0
        %v711 = vpop.trf.xlu0
        %v712 = vpop.trf.xlu0
        %v713 = vpop.trf.xlu0
        %v714 = vpop.trf.xlu0
        %v715 = vpop.trf.xlu0
        %v716 = vpop.trf.xlu0
        %v717 = vpop.trf.xlu0
        %v718 = vpop.trf.xlu0
        %v719 = vpop.trf.xlu0
        %v720 = vpop.trf.xlu0
        %v721 = vpop.trf.xlu0
        %722 = vxpose.xlu0.b32.start [1/16] %v353, 128
        %723 = vxpose.xlu0.b32.cont [2/16] %v355, 128
        %724 = vxpose.xlu0.b32.cont [3/16] %v357, 128
        %725 = vxpose.xlu0.b32.cont [4/16] %v359, 128
        %726 = vxpose.xlu0.b32.cont [5/16] %v361, 128
        %727 = vxpose.xlu0.b32.cont [6/16] %v363, 128
        %728 = vxpose.xlu0.b32.cont [7/16] %v365, 128
        %729 = vxpose.xlu0.b32.cont [8/16] %v367, 128
        %730 = vxpose.xlu0.b32.cont [9/16] %v369, 128
        %731 = vxpose.xlu0.b32.cont [10/16] %v371, 128
        %732 = vxpose.xlu0.b32.cont [11/16] %v373, 128
        %733 = vxpose.xlu0.b32.cont [12/16] %v375, 128
        %734 = vxpose.xlu0.b32.cont [13/16] %v377, 128
        %735 = vxpose.xlu0.b32.cont [14/16] %v379, 128
        %736 = vxpose.xlu0.b32.cont [15/16] %v381, 128
        %737 = vxpose.xlu0.b32.end [16/16] %v383, 128
        %v738 = vpop.trf.xlu0
        %v739 = vpop.trf.xlu0
        %v740 = vpop.trf.xlu0
        %v741 = vpop.trf.xlu0
        %v742 = vpop.trf.xlu0
        %v743 = vpop.trf.xlu0
        %v744 = vpop.trf.xlu0
        %v745 = vpop.trf.xlu0
        %v746 = vpop.trf.xlu0
        %v747 = vpop.trf.xlu0
        %v748 = vpop.trf.xlu0
        %v749 = vpop.trf.xlu0
        %v750 = vpop.trf.xlu0
        %v751 = vpop.trf.xlu0
        %v752 = vpop.trf.xlu0
        %v753 = vpop.trf.xlu0
        %754 = vxpose.xlu0.b32.start [1/16] %v354, 128
        %755 = vxpose.xlu0.b32.cont [2/16] %v356, 128
        %756 = vxpose.xlu0.b32.cont [3/16] %v358, 128
        %757 = vxpose.xlu0.b32.cont [4/16] %v360, 128
        %758 = vxpose.xlu0.b32.cont [5/16] %v362, 128
        %759 = vxpose.xlu0.b32.cont [6/16] %v364, 128
        %760 = vxpose.xlu0.b32.cont [7/16] %v366, 128
        %761 = vxpose.xlu0.b32.cont [8/16] %v368, 128
        %762 = vxpose.xlu0.b32.cont [9/16] %v370, 128
        %763 = vxpose.xlu0.b32.cont [10/16] %v372, 128
        %764 = vxpose.xlu0.b32.cont [11/16] %v374, 128
        %765 = vxpose.xlu0.b32.cont [12/16] %v376, 128
        %766 = vxpose.xlu0.b32.cont [13/16] %v378, 128
        %767 = vxpose.xlu0.b32.cont [14/16] %v380, 128
        %768 = vxpose.xlu0.b32.cont [15/16] %v382, 128
        %769 = vxpose.xlu0.b32.end [16/16] %v384, 128
        %v770 = vpop.trf.xlu0
        %v771 = vpop.trf.xlu0
        %v772 = vpop.trf.xlu0
        %v773 = vpop.trf.xlu0
        %v774 = vpop.trf.xlu0
        %v775 = vpop.trf.xlu0
        %v776 = vpop.trf.xlu0
        %v777 = vpop.trf.xlu0
        %v778 = vpop.trf.xlu0
        %v779 = vpop.trf.xlu0
        %v780 = vpop.trf.xlu0
        %v781 = vpop.trf.xlu0
        %v782 = vpop.trf.xlu0
        %v783 = vpop.trf.xlu0
        %v784 = vpop.trf.xlu0
        %v785 = vpop.trf.xlu0
        %786 = vxpose.xlu0.b32.start [1/16] %v385, 128
        %787 = vxpose.xlu0.b32.cont [2/16] %v387, 128
        %788 = vxpose.xlu0.b32.cont [3/16] %v389, 128
        %789 = vxpose.xlu0.b32.cont [4/16] %v391, 128
        %790 = vxpose.xlu0.b32.cont [5/16] %v393, 128
        %791 = vxpose.xlu0.b32.cont [6/16] %v395, 128
        %792 = vxpose.xlu0.b32.cont [7/16] %v397, 128
        %793 = vxpose.xlu0.b32.cont [8/16] %v399, 128
        %794 = vxpose.xlu0.b32.cont [9/16] %v401, 128
        %795 = vxpose.xlu0.b32.cont [10/16] %v403, 128
        %796 = vxpose.xlu0.b32.cont [11/16] %v405, 128
        %797 = vxpose.xlu0.b32.cont [12/16] %v407, 128
        %798 = vxpose.xlu0.b32.cont [13/16] %v409, 128
        %799 = vxpose.xlu0.b32.cont [14/16] %v411, 128
        %800 = vxpose.xlu0.b32.cont [15/16] %v413, 128
        %801 = vxpose.xlu0.b32.end [16/16] %v415, 128
        %v802 = vpop.trf.xlu0
        %v803 = vpop.trf.xlu0
        %v804 = vpop.trf.xlu0
        %v805 = vpop.trf.xlu0
        %v806 = vpop.trf.xlu0
        %v807 = vpop.trf.xlu0
        %v808 = vpop.trf.xlu0
        %v809 = vpop.trf.xlu0
        %v810 = vpop.trf.xlu0
        %v811 = vpop.trf.xlu0
        %v812 = vpop.trf.xlu0
        %v813 = vpop.trf.xlu0
        %v814 = vpop.trf.xlu0
        %v815 = vpop.trf.xlu0
        %v816 = vpop.trf.xlu0
        %v817 = vpop.trf.xlu0
        %818 = vxpose.xlu0.b32.start [1/16] %v386, 128
        %819 = vxpose.xlu0.b32.cont [2/16] %v388, 128
        %820 = vxpose.xlu0.b32.cont [3/16] %v390, 128
        %821 = vxpose.xlu0.b32.cont [4/16] %v392, 128
        %822 = vxpose.xlu0.b32.cont [5/16] %v394, 128
        %823 = vxpose.xlu0.b32.cont [6/16] %v396, 128
        %824 = vxpose.xlu0.b32.cont [7/16] %v398, 128
        %825 = vxpose.xlu0.b32.cont [8/16] %v400, 128
        %826 = vxpose.xlu0.b32.cont [9/16] %v402, 128
        %827 = vxpose.xlu0.b32.cont [10/16] %v404, 128
        %828 = vxpose.xlu0.b32.cont [11/16] %v406, 128
        %829 = vxpose.xlu0.b32.cont [12/16] %v408, 128
        %830 = vxpose.xlu0.b32.cont [13/16] %v410, 128
        %831 = vxpose.xlu0.b32.cont [14/16] %v412, 128
        %832 = vxpose.xlu0.b32.cont [15/16] %v414, 128
        %833 = vxpose.xlu0.b32.end [16/16] %v416, 128
        %v834 = vpop.trf.xlu0
        %v835 = vpop.trf.xlu0
        %v836 = vpop.trf.xlu0
        %v837 = vpop.trf.xlu0
        %v838 = vpop.trf.xlu0
        %v839 = vpop.trf.xlu0
        %v840 = vpop.trf.xlu0
        %v841 = vpop.trf.xlu0
        %v842 = vpop.trf.xlu0
        %v843 = vpop.trf.xlu0
        %v844 = vpop.trf.xlu0
        %v845 = vpop.trf.xlu0
        %v846 = vpop.trf.xlu0
        %v847 = vpop.trf.xlu0
        %v848 = vpop.trf.xlu0
        %v849 = vpop.trf.xlu0
        %850 = vxpose.xlu0.b32.start [1/16] %v417, 128
        %851 = vxpose.xlu0.b32.cont [2/16] %v419, 128
        %852 = vxpose.xlu0.b32.cont [3/16] %v421, 128
        %853 = vxpose.xlu0.b32.cont [4/16] %v423, 128
        %854 = vxpose.xlu0.b32.cont [5/16] %v425, 128
        %855 = vxpose.xlu0.b32.cont [6/16] %v427, 128
        %856 = vxpose.xlu0.b32.cont [7/16] %v429, 128
        %857 = vxpose.xlu0.b32.cont [8/16] %v431, 128
        %858 = vxpose.xlu0.b32.cont [9/16] %v433, 128
        %859 = vxpose.xlu0.b32.cont [10/16] %v435, 128
        %860 = vxpose.xlu0.b32.cont [11/16] %v437, 128
        %861 = vxpose.xlu0.b32.cont [12/16] %v439, 128
        %862 = vxpose.xlu0.b32.cont [13/16] %v441, 128
        %863 = vxpose.xlu0.b32.cont [14/16] %v443, 128
        %864 = vxpose.xlu0.b32.cont [15/16] %v445, 128
        %865 = vxpose.xlu0.b32.end [16/16] %v447, 128
        %v866 = vpop.trf.xlu0
        %v867 = vpop.trf.xlu0
        %v868 = vpop.trf.xlu0
        %v869 = vpop.trf.xlu0
        %v870 = vpop.trf.xlu0
        %v871 = vpop.trf.xlu0
        %v872 = vpop.trf.xlu0
        %v873 = vpop.trf.xlu0
        %v874 = vpop.trf.xlu0
        %v875 = vpop.trf.xlu0
        %v876 = vpop.trf.xlu0
        %v877 = vpop.trf.xlu0
        %v878 = vpop.trf.xlu0
        %v879 = vpop.trf.xlu0
        %v880 = vpop.trf.xlu0
        %v881 = vpop.trf.xlu0
        %882 = vxpose.xlu0.b32.start [1/16] %v418, 128
        %883 = vxpose.xlu0.b32.cont [2/16] %v420, 128
        %884 = vxpose.xlu0.b32.cont [3/16] %v422, 128
        %885 = vxpose.xlu0.b32.cont [4/16] %v424, 128
        %886 = vxpose.xlu0.b32.cont [5/16] %v426, 128
        %887 = vxpose.xlu0.b32.cont [6/16] %v428, 128
        %888 = vxpose.xlu0.b32.cont [7/16] %v430, 128
        %889 = vxpose.xlu0.b32.cont [8/16] %v432, 128
        %890 = vxpose.xlu0.b32.cont [9/16] %v434, 128
        %891 = vxpose.xlu0.b32.cont [10/16] %v436, 128
        %892 = vxpose.xlu0.b32.cont [11/16] %v438, 128
        %893 = vxpose.xlu0.b32.cont [12/16] %v440, 128
        %894 = vxpose.xlu0.b32.cont [13/16] %v442, 128
        %895 = vxpose.xlu0.b32.cont [14/16] %v444, 128
        %896 = vxpose.xlu0.b32.cont [15/16] %v446, 128
        %897 = vxpose.xlu0.b32.end [16/16] %v448, 128
        %v898 = vpop.trf.xlu0
        %v899 = vpop.trf.xlu0
        %v900 = vpop.trf.xlu0
        %v901 = vpop.trf.xlu0
        %v902 = vpop.trf.xlu0
        %v903 = vpop.trf.xlu0
        %v904 = vpop.trf.xlu0
        %v905 = vpop.trf.xlu0
        %v906 = vpop.trf.xlu0
        %v907 = vpop.trf.xlu0
        %v908 = vpop.trf.xlu0
        %v909 = vpop.trf.xlu0
        %v910 = vpop.trf.xlu0
        %v911 = vpop.trf.xlu0
        %v912 = vpop.trf.xlu0
        %v913 = vpop.trf.xlu0
        %914 = vxpose.xlu0.b32.start [1/16] %v449, 128
        %915 = vxpose.xlu0.b32.cont [2/16] %v451, 128
        %916 = vxpose.xlu0.b32.cont [3/16] %v453, 128
        %917 = vxpose.xlu0.b32.cont [4/16] %v455, 128
        %918 = vxpose.xlu0.b32.cont [5/16] %v457, 128
        %919 = vxpose.xlu0.b32.cont [6/16] %v459, 128
        %920 = vxpose.xlu0.b32.cont [7/16] %v461, 128
        %921 = vxpose.xlu0.b32.cont [8/16] %v463, 128
        %922 = vxpose.xlu0.b32.cont [9/16] %v465, 128
        %923 = vxpose.xlu0.b32.cont [10/16] %v467, 128
        %924 = vxpose.xlu0.b32.cont [11/16] %v469, 128
        %925 = vxpose.xlu0.b32.cont [12/16] %v471, 128
        %926 = vxpose.xlu0.b32.cont [13/16] %v473, 128
        %927 = vxpose.xlu0.b32.cont [14/16] %v475, 128
        %928 = vxpose.xlu0.b32.cont [15/16] %v477, 128
        %929 = vxpose.xlu0.b32.end [16/16] %v479, 128
        %v930 = vpop.trf.xlu0
        %v931 = vpop.trf.xlu0
        %v932 = vpop.trf.xlu0
        %v933 = vpop.trf.xlu0
        %v934 = vpop.trf.xlu0
        %v935 = vpop.trf.xlu0
        %v936 = vpop.trf.xlu0
        %v937 = vpop.trf.xlu0
        %v938 = vpop.trf.xlu0
        %v939 = vpop.trf.xlu0
        %v940 = vpop.trf.xlu0
        %v941 = vpop.trf.xlu0
        %v942 = vpop.trf.xlu0
        %v943 = vpop.trf.xlu0
        %v944 = vpop.trf.xlu0
        %v945 = vpop.trf.xlu0
        %946 = vxpose.xlu0.b32.start [1/16] %v450, 128
        %947 = vxpose.xlu0.b32.cont [2/16] %v452, 128
        %948 = vxpose.xlu0.b32.cont [3/16] %v454, 128
        %949 = vxpose.xlu0.b32.cont [4/16] %v456, 128
        %950 = vxpose.xlu0.b32.cont [5/16] %v458, 128
        %951 = vxpose.xlu0.b32.cont [6/16] %v460, 128
        %952 = vxpose.xlu0.b32.cont [7/16] %v462, 128
        %953 = vxpose.xlu0.b32.cont [8/16] %v464, 128
        %954 = vxpose.xlu0.b32.cont [9/16] %v466, 128
        %955 = vxpose.xlu0.b32.cont [10/16] %v468, 128
        %956 = vxpose.xlu0.b32.cont [11/16] %v470, 128
        %957 = vxpose.xlu0.b32.cont [12/16] %v472, 128
        %958 = vxpose.xlu0.b32.cont [13/16] %v474, 128
        %959 = vxpose.xlu0.b32.cont [14/16] %v476, 128
        %960 = vxpose.xlu0.b32.cont [15/16] %v478, 128
        %961 = vxpose.xlu0.b32.end [16/16] %v480, 128
        %v962 = vpop.trf.xlu0
        %v963 = vpop.trf.xlu0
        %v964 = vpop.trf.xlu0
        %v965 = vpop.trf.xlu0
        %v966 = vpop.trf.xlu0
        %v967 = vpop.trf.xlu0
        %v968 = vpop.trf.xlu0
        %v969 = vpop.trf.xlu0
        %v970 = vpop.trf.xlu0
        %v971 = vpop.trf.xlu0
        %v972 = vpop.trf.xlu0
        %v973 = vpop.trf.xlu0
        %v974 = vpop.trf.xlu0
        %v975 = vpop.trf.xlu0
        %v976 = vpop.trf.xlu0
        %v977 = vpop.trf.xlu0
        %978 = vxpose.xlu0.b32.start [1/16] %v481, 128
        %979 = vxpose.xlu0.b32.cont [2/16] %v483, 128
        %980 = vxpose.xlu0.b32.cont [3/16] %v485, 128
        %981 = vxpose.xlu0.b32.cont [4/16] %v487, 128
        %982 = vxpose.xlu0.b32.cont [5/16] %v489, 128
        %983 = vxpose.xlu0.b32.cont [6/16] %v491, 128
        %984 = vxpose.xlu0.b32.cont [7/16] %v493, 128
        %985 = vxpose.xlu0.b32.cont [8/16] %v495, 128
        %986 = vxpose.xlu0.b32.cont [9/16] %v497, 128
        %987 = vxpose.xlu0.b32.cont [10/16] %v499, 128
        %988 = vxpose.xlu0.b32.cont [11/16] %v501, 128
        %989 = vxpose.xlu0.b32.cont [12/16] %v503, 128
        %990 = vxpose.xlu0.b32.cont [13/16] %v505, 128
        %991 = vxpose.xlu0.b32.cont [14/16] %v507, 128
        %992 = vxpose.xlu0.b32.cont [15/16] %v509, 128
        %993 = vxpose.xlu0.b32.end [16/16] %v511, 128
        %v994 = vpop.trf.xlu0
        %v995 = vpop.trf.xlu0
        %v996 = vpop.trf.xlu0
        %v997 = vpop.trf.xlu0
        %v998 = vpop.trf.xlu0
        %v999 = vpop.trf.xlu0
        %v1000 = vpop.trf.xlu0
        %v1001 = vpop.trf.xlu0
        %v1002 = vpop.trf.xlu0
        %v1003 = vpop.trf.xlu0
        %v1004 = vpop.trf.xlu0
        %v1005 = vpop.trf.xlu0
        %v1006 = vpop.trf.xlu0
        %v1007 = vpop.trf.xlu0
        %v1008 = vpop.trf.xlu0
        %v1009 = vpop.trf.xlu0
        %1010 = vxpose.xlu0.b32.start [1/16] %v482, 128
        %1011 = vxpose.xlu0.b32.cont [2/16] %v484, 128
        %1012 = vxpose.xlu0.b32.cont [3/16] %v486, 128
        %1013 = vxpose.xlu0.b32.cont [4/16] %v488, 128
        %1014 = vxpose.xlu0.b32.cont [5/16] %v490, 128
        %1015 = vxpose.xlu0.b32.cont [6/16] %v492, 128
        %1016 = vxpose.xlu0.b32.cont [7/16] %v494, 128
        %1017 = vxpose.xlu0.b32.cont [8/16] %v496, 128
        %1018 = vxpose.xlu0.b32.cont [9/16] %v498, 128
        %1019 = vxpose.xlu0.b32.cont [10/16] %v500, 128
        %1020 = vxpose.xlu0.b32.cont [11/16] %v502, 128
        %1021 = vxpose.xlu0.b32.cont [12/16] %v504, 128
        %1022 = vxpose.xlu0.b32.cont [13/16] %v506, 128
        %1023 = vxpose.xlu0.b32.cont [14/16] %v508, 128
        %1024 = vxpose.xlu0.b32.cont [15/16] %v510, 128
        %1025 = vxpose.xlu0.b32.end [16/16] %v512, 128
        %v1026 = vpop.trf.xlu0
        %v1027 = vpop.trf.xlu0
        %v1028 = vpop.trf.xlu0
        %v1029 = vpop.trf.xlu0
        %v1030 = vpop.trf.xlu0
        %v1031 = vpop.trf.xlu0
        %v1032 = vpop.trf.xlu0
        %v1033 = vpop.trf.xlu0
        %v1034 = vpop.trf.xlu0
        %v1035 = vpop.trf.xlu0
        %v1036 = vpop.trf.xlu0
        %v1037 = vpop.trf.xlu0
        %v1038 = vpop.trf.xlu0
        %v1039 = vpop.trf.xlu0
        %v1040 = vpop.trf.xlu0
        %v1041 = vpop.trf.xlu0
        %v1042 = vadd.f32 %v546, %v547
        %v1043 = vadd.f32 %v1042, %v548
        %v1044 = vadd.f32 %v1043, %v549
        %v1045 = vadd.f32 %v1044, %v550
        %v1046 = vadd.f32 %v1045, %v551
        %v1047 = vadd.f32 %v1046, %v552
        %v1048 = vadd.f32 %v1047, %v553
        %v1049 = vadd.f32 %v1048, %v554
        %v1050 = vadd.f32 %v1049, %v555
        %v1051 = vadd.f32 %v1050, %v556
        %v1052 = vadd.f32 %v1051, %v557
        %v1053 = vadd.f32 %v1052, %v558
        %v1054 = vadd.f32 %v1053, %v559
        %v1055 = vadd.f32 %v1054, %v560
        %v1056 = vadd.f32 %v1055, %v561
        %v1057 = vadd.f32 %v1056, %v578
        %v1058 = vadd.f32 %v1057, %v579
        %v1059 = vadd.f32 %v1058, %v580
        %v1060 = vadd.f32 %v1059, %v581
        %v1061 = vadd.f32 %v1060, %v582
        %v1062 = vadd.f32 %v1061, %v583
        %v1063 = vadd.f32 %v1062, %v584
        %v1064 = vadd.f32 %v1063, %v585
        %v1065 = vadd.f32 %v1064, %v586
        %v1066 = vadd.f32 %v1065, %v587
        %v1067 = vadd.f32 %v1066, %v588
        %v1068 = vadd.f32 %v1067, %v589
        %v1069 = vadd.f32 %v1068, %v590
        %v1070 = vadd.f32 %v1069, %v591
        %v1071 = vadd.f32 %v1070, %v592
        %v1072 = vadd.f32 %v1071, %v593
        %v1073 = vrot.slane %v1072, 4
        %v1074 = vadd.f32 %v1072, %v1073
        %v1075 = vrot.slane %v1074, 2
        %v1076 = vadd.f32 %v1074, %v1075
        %v1077 = vrot.slane %v1076, 1
        %v1078 = vadd.f32 %v1076, %v1077
        %v1079 = vadd.f32 %v610, %v611
        %v1080 = vadd.f32 %v1079, %v612
        %v1081 = vadd.f32 %v1080, %v613
        %v1082 = vadd.f32 %v1081, %v614
        %v1083 = vadd.f32 %v1082, %v615
        %v1084 = vadd.f32 %v1083, %v616
        %v1085 = vadd.f32 %v1084, %v617
        %v1086 = vadd.f32 %v1085, %v618
        %v1087 = vadd.f32 %v1086, %v619
        %v1088 = vadd.f32 %v1087, %v620
        %v1089 = vadd.f32 %v1088, %v621
        %v1090 = vadd.f32 %v1089, %v622
        %v1091 = vadd.f32 %v1090, %v623
        %v1092 = vadd.f32 %v1091, %v624
        %v1093 = vadd.f32 %v1092, %v625
        %v1094 = vadd.f32 %v1093, %v642
        %v1095 = vadd.f32 %v1094, %v643
        %v1096 = vadd.f32 %v1095, %v644
        %v1097 = vadd.f32 %v1096, %v645
        %v1098 = vadd.f32 %v1097, %v646
        %v1099 = vadd.f32 %v1098, %v647
        %v1100 = vadd.f32 %v1099, %v648
        %v1101 = vadd.f32 %v1100, %v649
        %v1102 = vadd.f32 %v1101, %v650
        %v1103 = vadd.f32 %v1102, %v651
        %v1104 = vadd.f32 %v1103, %v652
        %v1105 = vadd.f32 %v1104, %v653
        %v1106 = vadd.f32 %v1105, %v654
        %v1107 = vadd.f32 %v1106, %v655
        %v1108 = vadd.f32 %v1107, %v656
        %v1109 = vadd.f32 %v1108, %v657
        %v1110 = vrot.slane %v1109, 4
        %v1111 = vadd.f32 %v1109, %v1110
        %v1112 = vrot.slane %v1111, 2
        %v1113 = vadd.f32 %v1111, %v1112
        %v1114 = vrot.slane %v1113, 1
        %v1115 = vadd.f32 %v1113, %v1114
        %v1116 = vadd.f32 %v674, %v675
        %v1117 = vadd.f32 %v1116, %v676
        %v1118 = vadd.f32 %v1117, %v677
        %v1119 = vadd.f32 %v1118, %v678
        %v1120 = vadd.f32 %v1119, %v679
        %v1121 = vadd.f32 %v1120, %v680
        %v1122 = vadd.f32 %v1121, %v681
        %v1123 = vadd.f32 %v1122, %v682
        %v1124 = vadd.f32 %v1123, %v683
        %v1125 = vadd.f32 %v1124, %v684
        %v1126 = vadd.f32 %v1125, %v685
        %v1127 = vadd.f32 %v1126, %v686
        %v1128 = vadd.f32 %v1127, %v687
        %v1129 = vadd.f32 %v1128, %v688
        %v1130 = vadd.f32 %v1129, %v689
        %v1131 = vadd.f32 %v1130, %v706
        %v1132 = vadd.f32 %v1131, %v707
        %v1133 = vadd.f32 %v1132, %v708
        %v1134 = vadd.f32 %v1133, %v709
        %v1135 = vadd.f32 %v1134, %v710
        %v1136 = vadd.f32 %v1135, %v711
        %v1137 = vadd.f32 %v1136, %v712
        %v1138 = vadd.f32 %v1137, %v713
        %v1139 = vadd.f32 %v1138, %v714
        %v1140 = vadd.f32 %v1139, %v715
        %v1141 = vadd.f32 %v1140, %v716
        %v1142 = vadd.f32 %v1141, %v717
        %v1143 = vadd.f32 %v1142, %v718
        %v1144 = vadd.f32 %v1143, %v719
        %v1145 = vadd.f32 %v1144, %v720
        %v1146 = vadd.f32 %v1145, %v721
        %v1147 = vrot.slane %v1146, 4
        %v1148 = vadd.f32 %v1146, %v1147
        %v1149 = vrot.slane %v1148, 2
        %v1150 = vadd.f32 %v1148, %v1149
        %v1151 = vrot.slane %v1150, 1
        %v1152 = vadd.f32 %v1150, %v1151
        %v1153 = vadd.f32 %v738, %v739
        %v1154 = vadd.f32 %v1153, %v740
        %v1155 = vadd.f32 %v1154, %v741
        %v1156 = vadd.f32 %v1155, %v742
        %v1157 = vadd.f32 %v1156, %v743
        %v1158 = vadd.f32 %v1157, %v744
        %v1159 = vadd.f32 %v1158, %v745
        %v1160 = vadd.f32 %v1159, %v746
        %v1161 = vadd.f32 %v1160, %v747
        %v1162 = vadd.f32 %v1161, %v748
        %v1163 = vadd.f32 %v1162, %v749
        %v1164 = vadd.f32 %v1163, %v750
        %v1165 = vadd.f32 %v1164, %v751
        %v1166 = vadd.f32 %v1165, %v752
        %v1167 = vadd.f32 %v1166, %v753
        %v1168 = vadd.f32 %v1167, %v770
        %v1169 = vadd.f32 %v1168, %v771
        %v1170 = vadd.f32 %v1169, %v772
        %v1171 = vadd.f32 %v1170, %v773
        %v1172 = vadd.f32 %v1171, %v774
        %v1173 = vadd.f32 %v1172, %v775
        %v1174 = vadd.f32 %v1173, %v776
        %v1175 = vadd.f32 %v1174, %v777
        %v1176 = vadd.f32 %v1175, %v778
        %v1177 = vadd.f32 %v1176, %v779
        %v1178 = vadd.f32 %v1177, %v780
        %v1179 = vadd.f32 %v1178, %v781
        %v1180 = vadd.f32 %v1179, %v782
        %v1181 = vadd.f32 %v1180, %v783
        %v1182 = vadd.f32 %v1181, %v784
        %v1183 = vadd.f32 %v1182, %v785
        %v1184 = vrot.slane %v1183, 4
        %v1185 = vadd.f32 %v1183, %v1184
        %v1186 = vrot.slane %v1185, 2
        %v1187 = vadd.f32 %v1185, %v1186
        %v1188 = vrot.slane %v1187, 1
        %v1189 = vadd.f32 %v1187, %v1188
        %v1190 = vadd.f32 %v802, %v803
        %v1191 = vadd.f32 %v1190, %v804
        %v1192 = vadd.f32 %v1191, %v805
        %v1193 = vadd.f32 %v1192, %v806
        %v1194 = vadd.f32 %v1193, %v807
        %v1195 = vadd.f32 %v1194, %v808
        %v1196 = vadd.f32 %v1195, %v809
        %v1197 = vadd.f32 %v1196, %v810
        %v1198 = vadd.f32 %v1197, %v811
        %v1199 = vadd.f32 %v1198, %v812
        %v1200 = vadd.f32 %v1199, %v813
        %v1201 = vadd.f32 %v1200, %v814
        %v1202 = vadd.f32 %v1201, %v815
        %v1203 = vadd.f32 %v1202, %v816
        %v1204 = vadd.f32 %v1203, %v817
        %v1205 = vadd.f32 %v1204, %v834
        %v1206 = vadd.f32 %v1205, %v835
        %v1207 = vadd.f32 %v1206, %v836
        %v1208 = vadd.f32 %v1207, %v837
        %v1209 = vadd.f32 %v1208, %v838
        %v1210 = vadd.f32 %v1209, %v839
        %v1211 = vadd.f32 %v1210, %v840
        %v1212 = vadd.f32 %v1211, %v841
        %v1213 = vadd.f32 %v1212, %v842
        %v1214 = vadd.f32 %v1213, %v843
        %v1215 = vadd.f32 %v1214, %v844
        %v1216 = vadd.f32 %v1215, %v845
        %v1217 = vadd.f32 %v1216, %v846
        %v1218 = vadd.f32 %v1217, %v847
        %v1219 = vadd.f32 %v1218, %v848
        %v1220 = vadd.f32 %v1219, %v849
        %v1221 = vrot.slane %v1220, 4
        %v1222 = vadd.f32 %v1220, %v1221
        %v1223 = vrot.slane %v1222, 2
        %v1224 = vadd.f32 %v1222, %v1223
        %v1225 = vrot.slane %v1224, 1
        %v1226 = vadd.f32 %v1224, %v1225
        %v1227 = vadd.f32 %v866, %v867
        %v1228 = vadd.f32 %v1227, %v868
        %v1229 = vadd.f32 %v1228, %v869
        %v1230 = vadd.f32 %v1229, %v870
        %v1231 = vadd.f32 %v1230, %v871
        %v1232 = vadd.f32 %v1231, %v872
        %v1233 = vadd.f32 %v1232, %v873
        %v1234 = vadd.f32 %v1233, %v874
        %v1235 = vadd.f32 %v1234, %v875
        %v1236 = vadd.f32 %v1235, %v876
        %v1237 = vadd.f32 %v1236, %v877
        %v1238 = vadd.f32 %v1237, %v878
        %v1239 = vadd.f32 %v1238, %v879
        %v1240 = vadd.f32 %v1239, %v880
        %v1241 = vadd.f32 %v1240, %v881
        %v1242 = vadd.f32 %v1241, %v898
        %v1243 = vadd.f32 %v1242, %v899
        %v1244 = vadd.f32 %v1243, %v900
        %v1245 = vadd.f32 %v1244, %v901
        %v1246 = vadd.f32 %v1245, %v902
        %v1247 = vadd.f32 %v1246, %v903
        %v1248 = vadd.f32 %v1247, %v904
        %v1249 = vadd.f32 %v1248, %v905
        %v1250 = vadd.f32 %v1249, %v906
        %v1251 = vadd.f32 %v1250, %v907
        %v1252 = vadd.f32 %v1251, %v908
        %v1253 = vadd.f32 %v1252, %v909
        %v1254 = vadd.f32 %v1253, %v910
        %v1255 = vadd.f32 %v1254, %v911
        %v1256 = vadd.f32 %v1255, %v912
        %v1257 = vadd.f32 %v1256, %v913
        %v1258 = vrot.slane %v1257, 4
        %v1259 = vadd.f32 %v1257, %v1258
        %v1260 = vrot.slane %v1259, 2
        %v1261 = vadd.f32 %v1259, %v1260
        %v1262 = vrot.slane %v1261, 1
        %v1263 = vadd.f32 %v1261, %v1262
        %v1264 = vadd.f32 %v930, %v931
        %v1265 = vadd.f32 %v1264, %v932
        %v1266 = vadd.f32 %v1265, %v933
        %v1267 = vadd.f32 %v1266, %v934
        %v1268 = vadd.f32 %v1267, %v935
        %v1269 = vadd.f32 %v1268, %v936
        %v1270 = vadd.f32 %v1269, %v937
        %v1271 = vadd.f32 %v1270, %v938
        %v1272 = vadd.f32 %v1271, %v939
        %v1273 = vadd.f32 %v1272, %v940
        %v1274 = vadd.f32 %v1273, %v941
        %v1275 = vadd.f32 %v1274, %v942
        %v1276 = vadd.f32 %v1275, %v943
        %v1277 = vadd.f32 %v1276, %v944
        %v1278 = vadd.f32 %v1277, %v945
        %v1279 = vadd.f32 %v1278, %v962
        %v1280 = vadd.f32 %v1279, %v963
        %v1281 = vadd.f32 %v1280, %v964
        %v1282 = vadd.f32 %v1281, %v965
        %v1283 = vadd.f32 %v1282, %v966
        %v1284 = vadd.f32 %v1283, %v967
        %v1285 = vadd.f32 %v1284, %v968
        %v1286 = vadd.f32 %v1285, %v969
        %v1287 = vadd.f32 %v1286, %v970
        %v1288 = vadd.f32 %v1287, %v971
        %v1289 = vadd.f32 %v1288, %v972
        %v1290 = vadd.f32 %v1289, %v973
        %v1291 = vadd.f32 %v1290, %v974
        %v1292 = vadd.f32 %v1291, %v975
        %v1293 = vadd.f32 %v1292, %v976
        %v1294 = vadd.f32 %v1293, %v977
        %v1295 = vrot.slane %v1294, 4
        %v1296 = vadd.f32 %v1294, %v1295
        %v1297 = vrot.slane %v1296, 2
        %v1298 = vadd.f32 %v1296, %v1297
        %v1299 = vrot.slane %v1298, 1
        %v1300 = vadd.f32 %v1298, %v1299
        %v1301 = vadd.f32 %v994, %v995
        %v1302 = vadd.f32 %v1301, %v996
        %v1303 = vadd.f32 %v1302, %v997
        %v1304 = vadd.f32 %v1303, %v998
        %v1305 = vadd.f32 %v1304, %v999
        %v1306 = vadd.f32 %v1305, %v1000
        %v1307 = vadd.f32 %v1306, %v1001
        %v1308 = vadd.f32 %v1307, %v1002
        %v1309 = vadd.f32 %v1308, %v1003
        %v1310 = vadd.f32 %v1309, %v1004
        %v1311 = vadd.f32 %v1310, %v1005
        %v1312 = vadd.f32 %v1311, %v1006
        %v1313 = vadd.f32 %v1312, %v1007
        %v1314 = vadd.f32 %v1313, %v1008
        %v1315 = vadd.f32 %v1314, %v1009
        %v1316 = vadd.f32 %v1315, %v1026
        %v1317 = vadd.f32 %v1316, %v1027
        %v1318 = vadd.f32 %v1317, %v1028
        %v1319 = vadd.f32 %v1318, %v1029
        %v1320 = vadd.f32 %v1319, %v1030
        %v1321 = vadd.f32 %v1320, %v1031
        %v1322 = vadd.f32 %v1321, %v1032
        %v1323 = vadd.f32 %v1322, %v1033
        %v1324 = vadd.f32 %v1323, %v1034
        %v1325 = vadd.f32 %v1324, %v1035
        %v1326 = vadd.f32 %v1325, %v1036
        %v1327 = vadd.f32 %v1326, %v1037
        %v1328 = vadd.f32 %v1327, %v1038
        %v1329 = vadd.f32 %v1328, %v1039
        %v1330 = vadd.f32 %v1329, %v1040
        %v1331 = vadd.f32 %v1330, %v1041
        %v1332 = vrot.slane %v1331, 4
        %v1333 = vadd.f32 %v1331, %v1332
        %v1334 = vrot.slane %v1333, 2
        %v1335 = vadd.f32 %v1333, %v1334
        %v1336 = vrot.slane %v1335, 1
        %v1337 = vadd.f32 %v1335, %v1336
        %v1338 = vmul.f32 %v1078, 0.00390625
        %v1339 = vmul.f32 %v1115, 0.00390625
        %v1340 = vmul.f32 %v1152, 0.00390625
        %v1341 = vmul.f32 %v1189, 0.00390625
        %v1342 = vmul.f32 %v1226, 0.00390625
        %v1343 = vmul.f32 %v1263, 0.00390625
        %v1344 = vmul.f32 %v1300, 0.00390625
        %v1345 = vmul.f32 %v1337, 0.00390625
        %v1347 = vlaneseq
        %v1348 = vshrl.u32 %v1347, 7
        %v1349 = vsub.s32 0, %v1348
        %v1350 = vrot.slane %v529, %v1349
        %vm1360 = vcmask 1041409
        %v1361 = vsel %vm1360, %v1339, %v1338
        %vm1362 = vcmask 1042434
        %v1363 = vsel %vm1362, %v1340, %v1361
        %vm1364 = vcmask 1043459
        %v1365 = vsel %vm1364, %v1341, %v1363
        %vm1366 = vcmask 1044484
        %v1367 = vsel %vm1366, %v1342, %v1365
        %vm1368 = vcmask 1045509
        %v1369 = vsel %vm1368, %v1343, %v1367
        %vm1370 = vcmask 1046534
        %v1371 = vsel %vm1370, %v1344, %v1369
        %vm1372 = vcmask 1047559
        %v1373 = vsel %vm1372, %v1345, %v1371
        %1375 = vmatprep.subr.mxu0 0.0
        %1376 = vmatpush1.msra.mxu0 %v513
        %1377 = vmatprep.subr.mxu0 0.0
        %1378 = vmatpush1.msra.mxu0 %v514
        %1379 = vmatprep.subr.mxu0 0.0
        %1380 = vmatpush1.msra.mxu0 %v515
        %1381 = vmatprep.subr.mxu0 0.0
        %1382 = vmatpush1.msra.mxu0 %v516
        %1383 = vmatprep.subr.mxu0 0.0
        %1384 = vmatpush1.msra.mxu0 %v517
        %1385 = vmatprep.subr.mxu0 0.0
        %1386 = vmatpush1.msra.mxu0 %v518
        %1387 = vmatprep.subr.mxu0 0.0
        %1388 = vmatpush1.msra.mxu0 %v519
        %1389 = vmatprep.subr.mxu0 0.0
        %1390 = vmatpush1.msra.mxu0 %v520
        %1391 = vmatprep.subr.mxu0 0.0
        %1392 = vmatpush1.msra.mxu0 %v521
        %1393 = vmatprep.subr.mxu0 0.0
        %1394 = vmatpush1.msra.mxu0 %v522
        %1395 = vmatprep.subr.mxu0 0.0
        %1396 = vmatpush1.msra.mxu0 %v523
        %1397 = vmatprep.subr.mxu0 0.0
        %1398 = vmatpush1.msra.mxu0 %v524
        %1399 = vmatprep.subr.mxu0 0.0
        %1400 = vmatpush1.msra.mxu0 %v525
        %1401 = vmatprep.subr.mxu0 0.0
        %1402 = vmatpush1.msra.mxu0 %v526
        %1403 = vmatprep.subr.mxu0 0.0
        %1404 = vmatpush1.msra.mxu0 %v527
        %1405 = vmatprep.subr.mxu0 0.0
        %1406 = vmatpush1.msra.mxu0 %v528
        %1407 = vmatprep.subr.mxu0 0.0
        %1408 = vmatpush1.msra.mxu0 0.0
        %1409 = vmatprep.subr.mxu0 0.0
        %1410 = vmatpush1.msra.mxu0 0.0
        %1411 = vmatprep.subr.mxu0 0.0
        %1412 = vmatpush1.msra.mxu0 0.0
        %1413 = vmatprep.subr.mxu0 0.0
        %1414 = vmatpush1.msra.mxu0 0.0
        %1415 = vmatprep.subr.mxu0 0.0
        %1416 = vmatpush1.msra.mxu0 0.0
        %1417 = vmatprep.subr.mxu0 0.0
        %1418 = vmatpush1.msra.mxu0 0.0
        %1419 = vmatprep.subr.mxu0 0.0
        %1420 = vmatpush1.msra.mxu0 0.0
        %1421 = vmatprep.subr.mxu0 0.0
        %1422 = vmatpush1.msra.mxu0 0.0
        %1423 = vmatprep.subr.mxu0 0.0
        %1424 = vmatpush1.msra.mxu0 0.0
        %1425 = vmatprep.subr.mxu0 0.0
        %1426 = vmatpush1.msra.mxu0 0.0
        %1427 = vmatprep.subr.mxu0 0.0
        %1428 = vmatpush1.msra.mxu0 0.0
        %1429 = vmatprep.subr.mxu0 0.0
        %1430 = vmatpush1.msra.mxu0 0.0
        %1431 = vmatprep.subr.mxu0 0.0
        %1432 = vmatpush1.msra.mxu0 0.0
        %1433 = vmatprep.subr.mxu0 0.0
        %1434 = vmatpush1.msra.mxu0 0.0
        %1435 = vmatprep.subr.mxu0 0.0
        %1436 = vmatpush1.msra.mxu0 0.0
        %1437 = vmatprep.subr.mxu0 0.0
        %1438 = vmatpush1.msra.mxu0 0.0
        %1439 = vmatprep.mubr.f32.mxu0 0.0
        %1440 = vmatmul.mubr.f32.gmra.mrb[0].mxu0 %v1373
        %v1441 = vpop.f32.mrb[0].mxu0
        %v1442 = vadd.f32 %v1350, %v1441
        %v1443 = vpop.f32.mrb[0].mxu0
        %1444 = vdwg.mxu0
        %1445 = vst [vmem:[%s254] sm:$0xff] %v1442
        %v1446 = vlaneseq
        %v1447 = vand.u32 %v1446, 127
        %vm1448 = vcmp.lt.s32.totalorder %v1447, 10
        %v1449 = vsel %vm1448, %v1442, -inf
        %1450 = vmax.xlane.f32.xlu0 %v1449
        %v1451 = vpop.xlane.xlu0 %1450
        %vm1452 = vcmp.eq.f32.partialorder %v1449, %v1451
        %v1453 = vsel %vm1452, %v1447, 128
        %v1454 = vand.u32 %v1453, 65535
        %v1455 = vshra.s32 %v1453, 16
        %v1456 = vcvt.s32.f32 %v1454
        %v1457 = vcvt.s32.f32 %v1455
        %1458 = vmin.xlane.f32.xlu0 %v1457
        %v1459 = vpop.xlane.xlu0 %1458
        %vm1460 = vcmp.eq.f32.partialorder %v1457, %v1459
        %v1461 = vsel %vm1460, %v1456, inf
        %1462 = vmin.xlane.f32.xlu0 %v1461
        %v1463 = vpop.xlane.xlu0 %1462
        %v1464 = vcvt.f32.s32 %v1463
        %v1465 = vcvt.f32.s32 %v1459
        %v1466 = vshll.u32 %v1465, 16
        %v1467 = vadd.s32 %v1466, %v1464
        %vm1468 = vcmp.eq.s32.totalorder %v1447, %v1467
        %v1469 = vsel %vm1468, 1, 0
        %v1470 = vcvt.s32.f32 %v1469
        %v1471 = vsel %vm1468, -inf, %v1449
        %1472 = vmax.xlane.f32.xlu0 %v1471
        %v1473 = vpop.xlane.xlu0 %1472
        %vm1474 = vcmp.eq.f32.partialorder %v1471, %v1473
        %v1475 = vsel %vm1474, %v1447, 128
        %v1476 = vand.u32 %v1475, 65535
        %v1477 = vshra.s32 %v1475, 16
        %v1478 = vcvt.s32.f32 %v1476
        %v1479 = vcvt.s32.f32 %v1477
        %1480 = vmin.xlane.f32.xlu0 %v1479
        %v1481 = vpop.xlane.xlu0 %1480
        %vm1482 = vcmp.eq.f32.partialorder %v1479, %v1481
        %v1483 = vsel %vm1482, %v1478, inf
        %1484 = vmin.xlane.f32.xlu0 %v1483
        %v1485 = vpop.xlane.xlu0 %1484
        %v1486 = vcvt.f32.s32 %v1485
        %v1487 = vcvt.f32.s32 %v1481
        %v1488 = vshll.u32 %v1487, 16
        %v1489 = vadd.s32 %v1488, %v1486
        %vm1490 = vcmp.eq.s32.totalorder %v1447, %v1489
        %v1491 = vsel %vm1490, 1, 0
        %v1492 = vcvt.s32.f32 %v1491
        %v1493 = vadd.f32 %v1470, %v1492
        %1494 = vmatprep.subr.mxu0 0.0
        %1495 = vmatpush1.xpose.msra.mxu0 %v513
        %1496 = vmatprep.subr.mxu0 0.0
        %1497 = vmatpush1.xpose.msra.mxu0 %v514
        %1498 = vmatprep.subr.mxu0 0.0
        %1499 = vmatpush1.xpose.msra.mxu0 %v515
        %1500 = vmatprep.subr.mxu0 0.0
        %1501 = vmatpush1.xpose.msra.mxu0 %v516
        %1502 = vmatprep.subr.mxu0 0.0
        %1503 = vmatpush1.xpose.msra.mxu0 %v517
        %1504 = vmatprep.subr.mxu0 0.0
        %1505 = vmatpush1.xpose.msra.mxu0 %v518
        %1506 = vmatprep.subr.mxu0 0.0
        %1507 = vmatpush1.xpose.msra.mxu0 %v519
        %1508 = vmatprep.subr.mxu0 0.0
        %1509 = vmatpush1.xpose.msra.mxu0 %v520
        %1510 = vmatprep.subr.mxu0 0.0
        %1511 = vmatpush1.xpose.msra.mxu0 %v521
        %1512 = vmatprep.subr.mxu0 0.0
        %1513 = vmatpush1.xpose.msra.mxu0 %v522
        %1514 = vmatprep.subr.mxu0 0.0
        %1515 = vmatpush1.xpose.msra.mxu0 %v523
        %1516 = vmatprep.subr.mxu0 0.0
        %1517 = vmatpush1.xpose.msra.mxu0 %v524
        %1518 = vmatprep.subr.mxu0 0.0
        %1519 = vmatpush1.xpose.msra.mxu0 %v525
        %1520 = vmatprep.subr.mxu0 0.0
        %1521 = vmatpush1.xpose.msra.mxu0 %v526
        %1522 = vmatprep.subr.mxu0 0.0
        %1523 = vmatpush1.xpose.msra.mxu0 %v527
        %1524 = vmatprep.subr.mxu0 0.0
        %1525 = vmatpush1.xpose.msra.mxu0 %v528
        %1526 = vmatprep.subr.mxu0 0.0
        %1527 = vmatpush1.xpose.msra.mxu0 0.0
        %1528 = vmatprep.subr.mxu0 0.0
        %1529 = vmatpush1.xpose.msra.mxu0 0.0
        %1530 = vmatprep.subr.mxu0 0.0
        %1531 = vmatpush1.xpose.msra.mxu0 0.0
        %1532 = vmatprep.subr.mxu0 0.0
        %1533 = vmatpush1.xpose.msra.mxu0 0.0
        %1534 = vmatprep.subr.mxu0 0.0
        %1535 = vmatpush1.xpose.msra.mxu0 0.0
        %1536 = vmatprep.subr.mxu0 0.0
        %1537 = vmatpush1.xpose.msra.mxu0 0.0
        %1538 = vmatprep.subr.mxu0 0.0
        %1539 = vmatpush1.xpose.msra.mxu0 0.0
        %1540 = vmatprep.subr.mxu0 0.0
        %1541 = vmatpush1.xpose.msra.mxu0 0.0
        %1542 = vmatprep.subr.mxu0 0.0
        %1543 = vmatpush1.xpose.msra.mxu0 0.0
        %1544 = vmatprep.subr.mxu0 0.0
        %1545 = vmatpush1.xpose.msra.mxu0 0.0
        %1546 = vmatprep.subr.mxu0 0.0
        %1547 = vmatpush1.xpose.msra.mxu0 0.0
        %1548 = vmatprep.subr.mxu0 0.0
        %1549 = vmatpush1.xpose.msra.mxu0 0.0
        %1550 = vmatprep.subr.mxu0 0.0
        %1551 = vmatpush1.xpose.msra.mxu0 0.0
        %1552 = vmatprep.subr.mxu0 0.0
        %1553 = vmatpush1.xpose.msra.mxu0 0.0
        %1554 = vmatprep.subr.mxu0 0.0
        %1555 = vmatpush1.xpose.msra.mxu0 0.0
        %1556 = vmatprep.subr.mxu0 0.0
        %1557 = vmatpush1.xpose.msra.mxu0 0.0
        %1558 = vmatprep.mubr.f32.mxu0 0.0
        %1559 = vmatmul.mubr.f32.gmra.mrb[0].mxu0 %v1493
        %v1560 = vpop.f32.mrb[0].mxu0
        %v1561 = vadd.f32 0.0, %v1560
        %v1562 = vpop.f32.mrb[0].mxu0
        %1563 = vdwg.mxu0
        %v1564 = vmul.f32 %v1561, 0.00390625
        %1565 = vmax.xlane.f32.xlu0 %v1564
        %v1566 = vpop.xlane.xlu0 %1565
        %v1567 = vsub.f32 %v1564, %v1566
        %v1568 = vmul.f32 %v1567, 1.442695
        %v1569 = vpow.pop %v1568
        %1570 = vadd.xlane.f32.xlu0 %v1569
        %v1571 = vpop.xlane.xlu0 %1570
        %v1572 = vmul.f32 %v1571, 256.0
        %v1573 = vrcp.pop %v1572
        %v1574 = vmul.f32 %v1569, %v1573
        %v1576 = vcombine.high %v1574, %v1574
        %v1578 = vunpack.c.l.s4 1966171168
        %v1579 = vunpack.c.0.s8 %v1578
        %v1580 = vlaneseq
        %v1581 = vshrl.u32 %v1580, 7
        %v1582 = vsub.s32 %v1579, %v1581
        %v1583 = vrot.slane %v1574, %v1582
        %v1585 = vunpack.c.l.s4 1966171168
        %v1586 = vunpack.c.0.s8 %v1585
        %v1587 = vlaneseq
        %v1588 = vshrl.u32 %v1587, 7
        %v1589 = vsub.s32 %v1586, %v1588
        %v1590 = vrot.slane %v1576, %v1589
        %v1591 = vcombine.high %v1583, %v1583
        %v1592 = vcombine.high %v1590, %v1590
        %v1594 = vunpack.c.l.s4 1966171168
        %v1595 = vunpack.c.0.s8 %v1594
        %v1596 = vlaneseq
        %v1597 = vshrl.u32 %v1596, 7
        %v1598 = vsub.s32 %v1595, %v1597
        %v1599 = vrot.slane %v1583, %v1598
        %v1601 = vunpack.c.l.s4 1966171168
        %v1602 = vunpack.c.0.s8 %v1601
        %v1603 = vlaneseq
        %v1604 = vshrl.u32 %v1603, 7
        %v1605 = vsub.s32 %v1602, %v1604
        %v1606 = vrot.slane %v1590, %v1605
        %v1608 = vunpack.c.l.s4 1966171168
        %v1609 = vunpack.c.0.s8 %v1608
        %v1610 = vlaneseq
        %v1611 = vshrl.u32 %v1610, 7
        %v1612 = vsub.s32 %v1609, %v1611
        %v1613 = vrot.slane %v1591, %v1612
        %v1615 = vunpack.c.l.s4 1966171168
        %v1616 = vunpack.c.0.s8 %v1615
        %v1617 = vlaneseq
        %v1618 = vshrl.u32 %v1617, 7
        %v1619 = vsub.s32 %v1616, %v1618
        %v1620 = vrot.slane %v1592, %v1619
        %v1621 = vcombine.high %v1599, %v1599
        %v1622 = vcombine.high %v1606, %v1606
        %v1623 = vcombine.high %v1613, %v1613
        %v1624 = vcombine.high %v1620, %v1620
        %v1625 = vlaneseq
        %v1626 = vshrl.u32 %v1625, 7
        %v1627 = vsub.s32 0, %v1626
        %v1628 = vrot.slane %v1599, %v1627
        %v1629 = vlaneseq
        %v1630 = vshrl.u32 %v1629, 7
        %v1631 = vsub.s32 0, %v1630
        %v1632 = vrot.slane %v1613, %v1631
        %v1633 = vlaneseq
        %v1634 = vshrl.u32 %v1633, 7
        %v1635 = vsub.s32 0, %v1634
        %v1636 = vrot.slane %v1621, %v1635
        %v1637 = vlaneseq
        %v1638 = vshrl.u32 %v1637, 7
        %v1639 = vsub.s32 0, %v1638
        %v1640 = vrot.slane %v1623, %v1639
        %v1641 = vlaneseq
        %v1642 = vshrl.u32 %v1641, 7
        %v1643 = vsub.s32 0, %v1642
        %v1644 = vrot.slane %v1606, %v1643
        %v1645 = vlaneseq
        %v1646 = vshrl.u32 %v1645, 7
        %v1647 = vsub.s32 0, %v1646
        %v1648 = vrot.slane %v1620, %v1647
        %v1649 = vlaneseq
        %v1650 = vshrl.u32 %v1649, 7
        %v1651 = vsub.s32 0, %v1650
        %v1652 = vrot.slane %v1622, %v1651
        %v1653 = vlaneseq
        %v1654 = vshrl.u32 %v1653, 7
        %v1655 = vsub.s32 0, %v1654
        %v1656 = vrot.slane %v1624, %v1655
        %v1665 = vmul.f32 %v546, %v1628
        %v1666 = vmul.f32 %v547, %v1628
        %v1667 = vmul.f32 %v548, %v1628
        %v1668 = vmul.f32 %v549, %v1628
        %v1669 = vmul.f32 %v550, %v1628
        %v1670 = vmul.f32 %v551, %v1628
        %v1671 = vmul.f32 %v552, %v1628
        %v1672 = vmul.f32 %v553, %v1628
        %v1673 = vmul.f32 %v554, %v1628
        %v1674 = vmul.f32 %v555, %v1628
        %v1675 = vmul.f32 %v556, %v1628
        %v1676 = vmul.f32 %v557, %v1628
        %v1677 = vmul.f32 %v558, %v1628
        %v1678 = vmul.f32 %v559, %v1628
        %v1679 = vmul.f32 %v560, %v1628
        %v1680 = vmul.f32 %v561, %v1628
        %v1681 = vmul.f32 %v578, %v1628
        %v1682 = vmul.f32 %v579, %v1628
        %v1683 = vmul.f32 %v580, %v1628
        %v1684 = vmul.f32 %v581, %v1628
        %v1685 = vmul.f32 %v582, %v1628
        %v1686 = vmul.f32 %v583, %v1628
        %v1687 = vmul.f32 %v584, %v1628
        %v1688 = vmul.f32 %v585, %v1628
        %v1689 = vmul.f32 %v586, %v1628
        %v1690 = vmul.f32 %v587, %v1628
        %v1691 = vmul.f32 %v588, %v1628
        %v1692 = vmul.f32 %v589, %v1628
        %v1693 = vmul.f32 %v590, %v1628
        %v1694 = vmul.f32 %v591, %v1628
        %v1695 = vmul.f32 %v592, %v1628
        %v1696 = vmul.f32 %v593, %v1628
        %v1697 = vmul.f32 %v610, %v1632
        %v1698 = vmul.f32 %v611, %v1632
        %v1699 = vmul.f32 %v612, %v1632
        %v1700 = vmul.f32 %v613, %v1632
        %v1701 = vmul.f32 %v614, %v1632
        %v1702 = vmul.f32 %v615, %v1632
        %v1703 = vmul.f32 %v616, %v1632
        %v1704 = vmul.f32 %v617, %v1632
        %v1705 = vmul.f32 %v618, %v1632
        %v1706 = vmul.f32 %v619, %v1632
        %v1707 = vmul.f32 %v620, %v1632
        %v1708 = vmul.f32 %v621, %v1632
        %v1709 = vmul.f32 %v622, %v1632
        %v1710 = vmul.f32 %v623, %v1632
        %v1711 = vmul.f32 %v624, %v1632
        %v1712 = vmul.f32 %v625, %v1632
        %v1713 = vmul.f32 %v642, %v1632
        %v1714 = vmul.f32 %v643, %v1632
        %v1715 = vmul.f32 %v644, %v1632
        %v1716 = vmul.f32 %v645, %v1632
        %v1717 = vmul.f32 %v646, %v1632
        %v1718 = vmul.f32 %v647, %v1632
        %v1719 = vmul.f32 %v648, %v1632
        %v1720 = vmul.f32 %v649, %v1632
        %v1721 = vmul.f32 %v650, %v1632
        %v1722 = vmul.f32 %v651, %v1632
        %v1723 = vmul.f32 %v652, %v1632
        %v1724 = vmul.f32 %v653, %v1632
        %v1725 = vmul.f32 %v654, %v1632
        %v1726 = vmul.f32 %v655, %v1632
        %v1727 = vmul.f32 %v656, %v1632
        %v1728 = vmul.f32 %v657, %v1632
        %v1729 = vmul.f32 %v674, %v1636
        %v1730 = vmul.f32 %v675, %v1636
        %v1731 = vmul.f32 %v676, %v1636
        %v1732 = vmul.f32 %v677, %v1636
        %v1733 = vmul.f32 %v678, %v1636
        %v1734 = vmul.f32 %v679, %v1636
        %v1735 = vmul.f32 %v680, %v1636
        %v1736 = vmul.f32 %v681, %v1636
        %v1737 = vmul.f32 %v682, %v1636
        %v1738 = vmul.f32 %v683, %v1636
        %v1739 = vmul.f32 %v684, %v1636
        %v1740 = vmul.f32 %v685, %v1636
        %v1741 = vmul.f32 %v686, %v1636
        %v1742 = vmul.f32 %v687, %v1636
        %v1743 = vmul.f32 %v688, %v1636
        %v1744 = vmul.f32 %v689, %v1636
        %v1745 = vmul.f32 %v706, %v1636
        %v1746 = vmul.f32 %v707, %v1636
        %v1747 = vmul.f32 %v708, %v1636
        %v1748 = vmul.f32 %v709, %v1636
        %v1749 = vmul.f32 %v710, %v1636
        %v1750 = vmul.f32 %v711, %v1636
        %v1751 = vmul.f32 %v712, %v1636
        %v1752 = vmul.f32 %v713, %v1636
        %v1753 = vmul.f32 %v714, %v1636
        %v1754 = vmul.f32 %v715, %v1636
        %v1755 = vmul.f32 %v716, %v1636
        %v1756 = vmul.f32 %v717, %v1636
        %v1757 = vmul.f32 %v718, %v1636
        %v1758 = vmul.f32 %v719, %v1636
        %v1759 = vmul.f32 %v720, %v1636
        %v1760 = vmul.f32 %v721, %v1636
        %v1761 = vmul.f32 %v738, %v1640
        %v1762 = vmul.f32 %v739, %v1640
        %v1763 = vmul.f32 %v740, %v1640
        %v1764 = vmul.f32 %v741, %v1640
        %v1765 = vmul.f32 %v742, %v1640
        %v1766 = vmul.f32 %v743, %v1640
        %v1767 = vmul.f32 %v744, %v1640
        %v1768 = vmul.f32 %v745, %v1640
        %v1769 = vmul.f32 %v746, %v1640
        %v1770 = vmul.f32 %v747, %v1640
        %v1771 = vmul.f32 %v748, %v1640
        %v1772 = vmul.f32 %v749, %v1640
        %v1773 = vmul.f32 %v750, %v1640
        %v1774 = vmul.f32 %v751, %v1640
        %v1775 = vmul.f32 %v752, %v1640
        %v1776 = vmul.f32 %v753, %v1640
        %v1777 = vmul.f32 %v770, %v1640
        %v1778 = vmul.f32 %v771, %v1640
        %v1779 = vmul.f32 %v772, %v1640
        %v1780 = vmul.f32 %v773, %v1640
        %v1781 = vmul.f32 %v774, %v1640
        %v1782 = vmul.f32 %v775, %v1640
        %v1783 = vmul.f32 %v776, %v1640
        %v1784 = vmul.f32 %v777, %v1640
        %v1785 = vmul.f32 %v778, %v1640
        %v1786 = vmul.f32 %v779, %v1640
        %v1787 = vmul.f32 %v780, %v1640
        %v1788 = vmul.f32 %v781, %v1640
        %v1789 = vmul.f32 %v782, %v1640
        %v1790 = vmul.f32 %v783, %v1640
        %v1791 = vmul.f32 %v784, %v1640
        %v1792 = vmul.f32 %v785, %v1640
        %v1793 = vmul.f32 %v802, %v1644
        %v1794 = vmul.f32 %v803, %v1644
        %v1795 = vmul.f32 %v804, %v1644
        %v1796 = vmul.f32 %v805, %v1644
        %v1797 = vmul.f32 %v806, %v1644
        %v1798 = vmul.f32 %v807, %v1644
        %v1799 = vmul.f32 %v808, %v1644
        %v1800 = vmul.f32 %v809, %v1644
        %v1801 = vmul.f32 %v810, %v1644
        %v1802 = vmul.f32 %v811, %v1644
        %v1803 = vmul.f32 %v812, %v1644
        %v1804 = vmul.f32 %v813, %v1644
        %v1805 = vmul.f32 %v814, %v1644
        %v1806 = vmul.f32 %v815, %v1644
        %v1807 = vmul.f32 %v816, %v1644
        %v1808 = vmul.f32 %v817, %v1644
        %v1809 = vmul.f32 %v834, %v1644
        %v1810 = vmul.f32 %v835, %v1644
        %v1811 = vmul.f32 %v836, %v1644
        %v1812 = vmul.f32 %v837, %v1644
        %v1813 = vmul.f32 %v838, %v1644
        %v1814 = vmul.f32 %v839, %v1644
        %v1815 = vmul.f32 %v840, %v1644
        %v1816 = vmul.f32 %v841, %v1644
        %v1817 = vmul.f32 %v842, %v1644
        %v1818 = vmul.f32 %v843, %v1644
        %v1819 = vmul.f32 %v844, %v1644
        %v1820 = vmul.f32 %v845, %v1644
        %v1821 = vmul.f32 %v846, %v1644
        %v1822 = vmul.f32 %v847, %v1644
        %v1823 = vmul.f32 %v848, %v1644
        %v1824 = vmul.f32 %v849, %v1644
        %v1825 = vmul.f32 %v866, %v1648
        %v1826 = vmul.f32 %v867, %v1648
        %v1827 = vmul.f32 %v868, %v1648
        %v1828 = vmul.f32 %v869, %v1648
        %v1829 = vmul.f32 %v870, %v1648
        %v1830 = vmul.f32 %v871, %v1648
        %v1831 = vmul.f32 %v872, %v1648
        %v1832 = vmul.f32 %v873, %v1648
        %v1833 = vmul.f32 %v874, %v1648
        %v1834 = vmul.f32 %v875, %v1648
        %v1835 = vmul.f32 %v876, %v1648
        %v1836 = vmul.f32 %v877, %v1648
        %v1837 = vmul.f32 %v878, %v1648
        %v1838 = vmul.f32 %v879, %v1648
        %v1839 = vmul.f32 %v880, %v1648
        %v1840 = vmul.f32 %v881, %v1648
        %v1841 = vmul.f32 %v898, %v1648
        %v1842 = vmul.f32 %v899, %v1648
        %v1843 = vmul.f32 %v900, %v1648
        %v1844 = vmul.f32 %v901, %v1648
        %v1845 = vmul.f32 %v902, %v1648
        %v1846 = vmul.f32 %v903, %v1648
        %v1847 = vmul.f32 %v904, %v1648
        %v1848 = vmul.f32 %v905, %v1648
        %v1849 = vmul.f32 %v906, %v1648
        %v1850 = vmul.f32 %v907, %v1648
        %v1851 = vmul.f32 %v908, %v1648
        %v1852 = vmul.f32 %v909, %v1648
        %v1853 = vmul.f32 %v910, %v1648
        %v1854 = vmul.f32 %v911, %v1648
        %v1855 = vmul.f32 %v912, %v1648
        %v1856 = vmul.f32 %v913, %v1648
        %v1857 = vmul.f32 %v930, %v1652
        %v1858 = vmul.f32 %v931, %v1652
        %v1859 = vmul.f32 %v932, %v1652
        %v1860 = vmul.f32 %v933, %v1652
        %v1861 = vmul.f32 %v934, %v1652
        %v1862 = vmul.f32 %v935, %v1652
        %v1863 = vmul.f32 %v936, %v1652
        %v1864 = vmul.f32 %v937, %v1652
        %v1865 = vmul.f32 %v938, %v1652
        %v1866 = vmul.f32 %v939, %v1652
        %v1867 = vmul.f32 %v940, %v1652
        %v1868 = vmul.f32 %v941, %v1652
        %v1869 = vmul.f32 %v942, %v1652
        %v1870 = vmul.f32 %v943, %v1652
        %v1871 = vmul.f32 %v944, %v1652
        %v1872 = vmul.f32 %v945, %v1652
        %v1873 = vmul.f32 %v962, %v1652
        %v1874 = vmul.f32 %v963, %v1652
        %v1875 = vmul.f32 %v964, %v1652
        %v1876 = vmul.f32 %v965, %v1652
        %v1877 = vmul.f32 %v966, %v1652
        %v1878 = vmul.f32 %v967, %v1652
        %v1879 = vmul.f32 %v968, %v1652
        %v1880 = vmul.f32 %v969, %v1652
        %v1881 = vmul.f32 %v970, %v1652
        %v1882 = vmul.f32 %v971, %v1652
        %v1883 = vmul.f32 %v972, %v1652
        %v1884 = vmul.f32 %v973, %v1652
        %v1885 = vmul.f32 %v974, %v1652
        %v1886 = vmul.f32 %v975, %v1652
        %v1887 = vmul.f32 %v976, %v1652
        %v1888 = vmul.f32 %v977, %v1652
        %v1889 = vmul.f32 %v994, %v1656
        %v1890 = vmul.f32 %v995, %v1656
        %v1891 = vmul.f32 %v996, %v1656
        %v1892 = vmul.f32 %v997, %v1656
        %v1893 = vmul.f32 %v998, %v1656
        %v1894 = vmul.f32 %v999, %v1656
        %v1895 = vmul.f32 %v1000, %v1656
        %v1896 = vmul.f32 %v1001, %v1656
        %v1897 = vmul.f32 %v1002, %v1656
        %v1898 = vmul.f32 %v1003, %v1656
        %v1899 = vmul.f32 %v1004, %v1656
        %v1900 = vmul.f32 %v1005, %v1656
        %v1901 = vmul.f32 %v1006, %v1656
        %v1902 = vmul.f32 %v1007, %v1656
        %v1903 = vmul.f32 %v1008, %v1656
        %v1904 = vmul.f32 %v1009, %v1656
        %v1905 = vmul.f32 %v1026, %v1656
        %v1906 = vmul.f32 %v1027, %v1656
        %v1907 = vmul.f32 %v1028, %v1656
        %v1908 = vmul.f32 %v1029, %v1656
        %v1909 = vmul.f32 %v1030, %v1656
        %v1910 = vmul.f32 %v1031, %v1656
        %v1911 = vmul.f32 %v1032, %v1656
        %v1912 = vmul.f32 %v1033, %v1656
        %v1913 = vmul.f32 %v1034, %v1656
        %v1914 = vmul.f32 %v1035, %v1656
        %v1915 = vmul.f32 %v1036, %v1656
        %v1916 = vmul.f32 %v1037, %v1656
        %v1917 = vmul.f32 %v1038, %v1656
        %v1918 = vmul.f32 %v1039, %v1656
        %v1919 = vmul.f32 %v1040, %v1656
        %v1920 = vmul.f32 %v1041, %v1656
        %1921 = vxpose.xlu0.b32.start [1/16] %v1665, 128
        %1922 = vxpose.xlu0.b32.cont [2/16] %v1666, 128
        %1923 = vxpose.xlu0.b32.cont [3/16] %v1667, 128
        %1924 = vxpose.xlu0.b32.cont [4/16] %v1668, 128
        %1925 = vxpose.xlu0.b32.cont [5/16] %v1669, 128
        %1926 = vxpose.xlu0.b32.cont [6/16] %v1670, 128
        %1927 = vxpose.xlu0.b32.cont [7/16] %v1671, 128
        %1928 = vxpose.xlu0.b32.cont [8/16] %v1672, 128
        %1929 = vxpose.xlu0.b32.cont [9/16] %v1673, 128
        %1930 = vxpose.xlu0.b32.cont [10/16] %v1674, 128
        %1931 = vxpose.xlu0.b32.cont [11/16] %v1675, 128
        %1932 = vxpose.xlu0.b32.cont [12/16] %v1676, 128
        %1933 = vxpose.xlu0.b32.cont [13/16] %v1677, 128
        %1934 = vxpose.xlu0.b32.cont [14/16] %v1678, 128
        %1935 = vxpose.xlu0.b32.cont [15/16] %v1679, 128
        %1936 = vxpose.xlu0.b32.end [16/16] %v1680, 128
        %v1937 = vpop.trf.xlu0
        %v1938 = vpop.trf.xlu0
        %v1939 = vpop.trf.xlu0
        %v1940 = vpop.trf.xlu0
        %v1941 = vpop.trf.xlu0
        %v1942 = vpop.trf.xlu0
        %v1943 = vpop.trf.xlu0
        %v1944 = vpop.trf.xlu0
        %v1945 = vpop.trf.xlu0
        %v1946 = vpop.trf.xlu0
        %v1947 = vpop.trf.xlu0
        %v1948 = vpop.trf.xlu0
        %v1949 = vpop.trf.xlu0
        %v1950 = vpop.trf.xlu0
        %v1951 = vpop.trf.xlu0
        %v1952 = vpop.trf.xlu0
        %1953 = vxpose.xlu0.b32.start [1/16] %v1681, 128
        %1954 = vxpose.xlu0.b32.cont [2/16] %v1682, 128
        %1955 = vxpose.xlu0.b32.cont [3/16] %v1683, 128
        %1956 = vxpose.xlu0.b32.cont [4/16] %v1684, 128
        %1957 = vxpose.xlu0.b32.cont [5/16] %v1685, 128
        %1958 = vxpose.xlu0.b32.cont [6/16] %v1686, 128
        %1959 = vxpose.xlu0.b32.cont [7/16] %v1687, 128
        %1960 = vxpose.xlu0.b32.cont [8/16] %v1688, 128
        %1961 = vxpose.xlu0.b32.cont [9/16] %v1689, 128
        %1962 = vxpose.xlu0.b32.cont [10/16] %v1690, 128
        %1963 = vxpose.xlu0.b32.cont [11/16] %v1691, 128
        %1964 = vxpose.xlu0.b32.cont [12/16] %v1692, 128
        %1965 = vxpose.xlu0.b32.cont [13/16] %v1693, 128
        %1966 = vxpose.xlu0.b32.cont [14/16] %v1694, 128
        %1967 = vxpose.xlu0.b32.cont [15/16] %v1695, 128
        %1968 = vxpose.xlu0.b32.end [16/16] %v1696, 128
        %v1969 = vpop.trf.xlu0
        %v1970 = vpop.trf.xlu0
        %v1971 = vpop.trf.xlu0
        %v1972 = vpop.trf.xlu0
        %v1973 = vpop.trf.xlu0
        %v1974 = vpop.trf.xlu0
        %v1975 = vpop.trf.xlu0
        %v1976 = vpop.trf.xlu0
        %v1977 = vpop.trf.xlu0
        %v1978 = vpop.trf.xlu0
        %v1979 = vpop.trf.xlu0
        %v1980 = vpop.trf.xlu0
        %v1981 = vpop.trf.xlu0
        %v1982 = vpop.trf.xlu0
        %v1983 = vpop.trf.xlu0
        %v1984 = vpop.trf.xlu0
        %1985 = vxpose.xlu0.b32.start [1/16] %v1697, 128
        %1986 = vxpose.xlu0.b32.cont [2/16] %v1698, 128
        %1987 = vxpose.xlu0.b32.cont [3/16] %v1699, 128
        %1988 = vxpose.xlu0.b32.cont [4/16] %v1700, 128
        %1989 = vxpose.xlu0.b32.cont [5/16] %v1701, 128
        %1990 = vxpose.xlu0.b32.cont [6/16] %v1702, 128
        %1991 = vxpose.xlu0.b32.cont [7/16] %v1703, 128
        %1992 = vxpose.xlu0.b32.cont [8/16] %v1704, 128
        %1993 = vxpose.xlu0.b32.cont [9/16] %v1705, 128
        %1994 = vxpose.xlu0.b32.cont [10/16] %v1706, 128
        %1995 = vxpose.xlu0.b32.cont [11/16] %v1707, 128
        %1996 = vxpose.xlu0.b32.cont [12/16] %v1708, 128
        %1997 = vxpose.xlu0.b32.cont [13/16] %v1709, 128
        %1998 = vxpose.xlu0.b32.cont [14/16] %v1710, 128
        %1999 = vxpose.xlu0.b32.cont [15/16] %v1711, 128
        %2000 = vxpose.xlu0.b32.end [16/16] %v1712, 128
        %v2001 = vpop.trf.xlu0
        %v2002 = vpop.trf.xlu0
        %v2003 = vpop.trf.xlu0
        %v2004 = vpop.trf.xlu0
        %v2005 = vpop.trf.xlu0
        %v2006 = vpop.trf.xlu0
        %v2007 = vpop.trf.xlu0
        %v2008 = vpop.trf.xlu0
        %v2009 = vpop.trf.xlu0
        %v2010 = vpop.trf.xlu0
        %v2011 = vpop.trf.xlu0
        %v2012 = vpop.trf.xlu0
        %v2013 = vpop.trf.xlu0
        %v2014 = vpop.trf.xlu0
        %v2015 = vpop.trf.xlu0
        %v2016 = vpop.trf.xlu0
        %2017 = vxpose.xlu0.b32.start [1/16] %v1713, 128
        %2018 = vxpose.xlu0.b32.cont [2/16] %v1714, 128
        %2019 = vxpose.xlu0.b32.cont [3/16] %v1715, 128
        %2020 = vxpose.xlu0.b32.cont [4/16] %v1716, 128
        %2021 = vxpose.xlu0.b32.cont [5/16] %v1717, 128
        %2022 = vxpose.xlu0.b32.cont [6/16] %v1718, 128
        %2023 = vxpose.xlu0.b32.cont [7/16] %v1719, 128
        %2024 = vxpose.xlu0.b32.cont [8/16] %v1720, 128
        %2025 = vxpose.xlu0.b32.cont [9/16] %v1721, 128
        %2026 = vxpose.xlu0.b32.cont [10/16] %v1722, 128
        %2027 = vxpose.xlu0.b32.cont [11/16] %v1723, 128
        %2028 = vxpose.xlu0.b32.cont [12/16] %v1724, 128
        %2029 = vxpose.xlu0.b32.cont [13/16] %v1725, 128
        %2030 = vxpose.xlu0.b32.cont [14/16] %v1726, 128
        %2031 = vxpose.xlu0.b32.cont [15/16] %v1727, 128
        %2032 = vxpose.xlu0.b32.end [16/16] %v1728, 128
        %v2033 = vpop.trf.xlu0
        %v2034 = vpop.trf.xlu0
        %v2035 = vpop.trf.xlu0
        %v2036 = vpop.trf.xlu0
        %v2037 = vpop.trf.xlu0
        %v2038 = vpop.trf.xlu0
        %v2039 = vpop.trf.xlu0
        %v2040 = vpop.trf.xlu0
        %v2041 = vpop.trf.xlu0
        %v2042 = vpop.trf.xlu0
        %v2043 = vpop.trf.xlu0
        %v2044 = vpop.trf.xlu0
        %v2045 = vpop.trf.xlu0
        %v2046 = vpop.trf.xlu0
        %v2047 = vpop.trf.xlu0
        %v2048 = vpop.trf.xlu0
        %2049 = vxpose.xlu0.b32.start [1/16] %v1729, 128
        %2050 = vxpose.xlu0.b32.cont [2/16] %v1730, 128
        %2051 = vxpose.xlu0.b32.cont [3/16] %v1731, 128
        %2052 = vxpose.xlu0.b32.cont [4/16] %v1732, 128
        %2053 = vxpose.xlu0.b32.cont [5/16] %v1733, 128
        %2054 = vxpose.xlu0.b32.cont [6/16] %v1734, 128
        %2055 = vxpose.xlu0.b32.cont [7/16] %v1735, 128
        %2056 = vxpose.xlu0.b32.cont [8/16] %v1736, 128
        %2057 = vxpose.xlu0.b32.cont [9/16] %v1737, 128
        %2058 = vxpose.xlu0.b32.cont [10/16] %v1738, 128
        %2059 = vxpose.xlu0.b32.cont [11/16] %v1739, 128
        %2060 = vxpose.xlu0.b32.cont [12/16] %v1740, 128
        %2061 = vxpose.xlu0.b32.cont [13/16] %v1741, 128
        %2062 = vxpose.xlu0.b32.cont [14/16] %v1742, 128
        %2063 = vxpose.xlu0.b32.cont [15/16] %v1743, 128
        %2064 = vxpose.xlu0.b32.end [16/16] %v1744, 128
        %v2065 = vpop.trf.xlu0
        %v2066 = vpop.trf.xlu0
        %v2067 = vpop.trf.xlu0
        %v2068 = vpop.trf.xlu0
        %v2069 = vpop.trf.xlu0
        %v2070 = vpop.trf.xlu0
        %v2071 = vpop.trf.xlu0
        %v2072 = vpop.trf.xlu0
        %v2073 = vpop.trf.xlu0
        %v2074 = vpop.trf.xlu0
        %v2075 = vpop.trf.xlu0
        %v2076 = vpop.trf.xlu0
        %v2077 = vpop.trf.xlu0
        %v2078 = vpop.trf.xlu0
        %v2079 = vpop.trf.xlu0
        %v2080 = vpop.trf.xlu0
        %2081 = vxpose.xlu0.b32.start [1/16] %v1745, 128
        %2082 = vxpose.xlu0.b32.cont [2/16] %v1746, 128
        %2083 = vxpose.xlu0.b32.cont [3/16] %v1747, 128
        %2084 = vxpose.xlu0.b32.cont [4/16] %v1748, 128
        %2085 = vxpose.xlu0.b32.cont [5/16] %v1749, 128
        %2086 = vxpose.xlu0.b32.cont [6/16] %v1750, 128
        %2087 = vxpose.xlu0.b32.cont [7/16] %v1751, 128
        %2088 = vxpose.xlu0.b32.cont [8/16] %v1752, 128
        %2089 = vxpose.xlu0.b32.cont [9/16] %v1753, 128
        %2090 = vxpose.xlu0.b32.cont [10/16] %v1754, 128
        %2091 = vxpose.xlu0.b32.cont [11/16] %v1755, 128
        %2092 = vxpose.xlu0.b32.cont [12/16] %v1756, 128
        %2093 = vxpose.xlu0.b32.cont [13/16] %v1757, 128
        %2094 = vxpose.xlu0.b32.cont [14/16] %v1758, 128
        %2095 = vxpose.xlu0.b32.cont [15/16] %v1759, 128
        %2096 = vxpose.xlu0.b32.end [16/16] %v1760, 128
        %v2097 = vpop.trf.xlu0
        %v2098 = vpop.trf.xlu0
        %v2099 = vpop.trf.xlu0
        %v2100 = vpop.trf.xlu0
        %v2101 = vpop.trf.xlu0
        %v2102 = vpop.trf.xlu0
        %v2103 = vpop.trf.xlu0
        %v2104 = vpop.trf.xlu0
        %v2105 = vpop.trf.xlu0
        %v2106 = vpop.trf.xlu0
        %v2107 = vpop.trf.xlu0
        %v2108 = vpop.trf.xlu0
        %v2109 = vpop.trf.xlu0
        %v2110 = vpop.trf.xlu0
        %v2111 = vpop.trf.xlu0
        %v2112 = vpop.trf.xlu0
        %2113 = vxpose.xlu0.b32.start [1/16] %v1761, 128
        %2114 = vxpose.xlu0.b32.cont [2/16] %v1762, 128
        %2115 = vxpose.xlu0.b32.cont [3/16] %v1763, 128
        %2116 = vxpose.xlu0.b32.cont [4/16] %v1764, 128
        %2117 = vxpose.xlu0.b32.cont [5/16] %v1765, 128
        %2118 = vxpose.xlu0.b32.cont [6/16] %v1766, 128
        %2119 = vxpose.xlu0.b32.cont [7/16] %v1767, 128
        %2120 = vxpose.xlu0.b32.cont [8/16] %v1768, 128
        %2121 = vxpose.xlu0.b32.cont [9/16] %v1769, 128
        %2122 = vxpose.xlu0.b32.cont [10/16] %v1770, 128
        %2123 = vxpose.xlu0.b32.cont [11/16] %v1771, 128
        %2124 = vxpose.xlu0.b32.cont [12/16] %v1772, 128
        %2125 = vxpose.xlu0.b32.cont [13/16] %v1773, 128
        %2126 = vxpose.xlu0.b32.cont [14/16] %v1774, 128
        %2127 = vxpose.xlu0.b32.cont [15/16] %v1775, 128
        %2128 = vxpose.xlu0.b32.end [16/16] %v1776, 128
        %v2129 = vpop.trf.xlu0
        %v2130 = vpop.trf.xlu0
        %v2131 = vpop.trf.xlu0
        %v2132 = vpop.trf.xlu0
        %v2133 = vpop.trf.xlu0
        %v2134 = vpop.trf.xlu0
        %v2135 = vpop.trf.xlu0
        %v2136 = vpop.trf.xlu0
        %v2137 = vpop.trf.xlu0
        %v2138 = vpop.trf.xlu0
        %v2139 = vpop.trf.xlu0
        %v2140 = vpop.trf.xlu0
        %v2141 = vpop.trf.xlu0
        %v2142 = vpop.trf.xlu0
        %v2143 = vpop.trf.xlu0
        %v2144 = vpop.trf.xlu0
        %2145 = vxpose.xlu0.b32.start [1/16] %v1777, 128
        %2146 = vxpose.xlu0.b32.cont [2/16] %v1778, 128
        %2147 = vxpose.xlu0.b32.cont [3/16] %v1779, 128
        %2148 = vxpose.xlu0.b32.cont [4/16] %v1780, 128
        %2149 = vxpose.xlu0.b32.cont [5/16] %v1781, 128
        %2150 = vxpose.xlu0.b32.cont [6/16] %v1782, 128
        %2151 = vxpose.xlu0.b32.cont [7/16] %v1783, 128
        %2152 = vxpose.xlu0.b32.cont [8/16] %v1784, 128
        %2153 = vxpose.xlu0.b32.cont [9/16] %v1785, 128
        %2154 = vxpose.xlu0.b32.cont [10/16] %v1786, 128
        %2155 = vxpose.xlu0.b32.cont [11/16] %v1787, 128
        %2156 = vxpose.xlu0.b32.cont [12/16] %v1788, 128
        %2157 = vxpose.xlu0.b32.cont [13/16] %v1789, 128
        %2158 = vxpose.xlu0.b32.cont [14/16] %v1790, 128
        %2159 = vxpose.xlu0.b32.cont [15/16] %v1791, 128
        %2160 = vxpose.xlu0.b32.end [16/16] %v1792, 128
        %v2161 = vpop.trf.xlu0
        %v2162 = vpop.trf.xlu0
        %v2163 = vpop.trf.xlu0
        %v2164 = vpop.trf.xlu0
        %v2165 = vpop.trf.xlu0
        %v2166 = vpop.trf.xlu0
        %v2167 = vpop.trf.xlu0
        %v2168 = vpop.trf.xlu0
        %v2169 = vpop.trf.xlu0
        %v2170 = vpop.trf.xlu0
        %v2171 = vpop.trf.xlu0
        %v2172 = vpop.trf.xlu0
        %v2173 = vpop.trf.xlu0
        %v2174 = vpop.trf.xlu0
        %v2175 = vpop.trf.xlu0
        %v2176 = vpop.trf.xlu0
        %2177 = vxpose.xlu0.b32.start [1/16] %v1793, 128
        %2178 = vxpose.xlu0.b32.cont [2/16] %v1794, 128
        %2179 = vxpose.xlu0.b32.cont [3/16] %v1795, 128
        %2180 = vxpose.xlu0.b32.cont [4/16] %v1796, 128
        %2181 = vxpose.xlu0.b32.cont [5/16] %v1797, 128
        %2182 = vxpose.xlu0.b32.cont [6/16] %v1798, 128
        %2183 = vxpose.xlu0.b32.cont [7/16] %v1799, 128
        %2184 = vxpose.xlu0.b32.cont [8/16] %v1800, 128
        %2185 = vxpose.xlu0.b32.cont [9/16] %v1801, 128
        %2186 = vxpose.xlu0.b32.cont [10/16] %v1802, 128
        %2187 = vxpose.xlu0.b32.cont [11/16] %v1803, 128
        %2188 = vxpose.xlu0.b32.cont [12/16] %v1804, 128
        %2189 = vxpose.xlu0.b32.cont [13/16] %v1805, 128
        %2190 = vxpose.xlu0.b32.cont [14/16] %v1806, 128
        %2191 = vxpose.xlu0.b32.cont [15/16] %v1807, 128
        %2192 = vxpose.xlu0.b32.end [16/16] %v1808, 128
        %v2193 = vpop.trf.xlu0
        %v2194 = vpop.trf.xlu0
        %v2195 = vpop.trf.xlu0
        %v2196 = vpop.trf.xlu0
        %v2197 = vpop.trf.xlu0
        %v2198 = vpop.trf.xlu0
        %v2199 = vpop.trf.xlu0
        %v2200 = vpop.trf.xlu0
        %v2201 = vpop.trf.xlu0
        %v2202 = vpop.trf.xlu0
        %v2203 = vpop.trf.xlu0
        %v2204 = vpop.trf.xlu0
        %v2205 = vpop.trf.xlu0
        %v2206 = vpop.trf.xlu0
        %v2207 = vpop.trf.xlu0
        %v2208 = vpop.trf.xlu0
        %2209 = vxpose.xlu0.b32.start [1/16] %v1809, 128
        %2210 = vxpose.xlu0.b32.cont [2/16] %v1810, 128
        %2211 = vxpose.xlu0.b32.cont [3/16] %v1811, 128
        %2212 = vxpose.xlu0.b32.cont [4/16] %v1812, 128
        %2213 = vxpose.xlu0.b32.cont [5/16] %v1813, 128
        %2214 = vxpose.xlu0.b32.cont [6/16] %v1814, 128
        %2215 = vxpose.xlu0.b32.cont [7/16] %v1815, 128
        %2216 = vxpose.xlu0.b32.cont [8/16] %v1816, 128
        %2217 = vxpose.xlu0.b32.cont [9/16] %v1817, 128
        %2218 = vxpose.xlu0.b32.cont [10/16] %v1818, 128
        %2219 = vxpose.xlu0.b32.cont [11/16] %v1819, 128
        %2220 = vxpose.xlu0.b32.cont [12/16] %v1820, 128
        %2221 = vxpose.xlu0.b32.cont [13/16] %v1821, 128
        %2222 = vxpose.xlu0.b32.cont [14/16] %v1822, 128
        %2223 = vxpose.xlu0.b32.cont [15/16] %v1823, 128
        %2224 = vxpose.xlu0.b32.end [16/16] %v1824, 128
        %v2225 = vpop.trf.xlu0
        %v2226 = vpop.trf.xlu0
        %v2227 = vpop.trf.xlu0
        %v2228 = vpop.trf.xlu0
        %v2229 = vpop.trf.xlu0
        %v2230 = vpop.trf.xlu0
        %v2231 = vpop.trf.xlu0
        %v2232 = vpop.trf.xlu0
        %v2233 = vpop.trf.xlu0
        %v2234 = vpop.trf.xlu0
        %v2235 = vpop.trf.xlu0
        %v2236 = vpop.trf.xlu0
        %v2237 = vpop.trf.xlu0
        %v2238 = vpop.trf.xlu0
        %v2239 = vpop.trf.xlu0
        %v2240 = vpop.trf.xlu0
        %2241 = vxpose.xlu0.b32.start [1/16] %v1825, 128
        %2242 = vxpose.xlu0.b32.cont [2/16] %v1826, 128
        %2243 = vxpose.xlu0.b32.cont [3/16] %v1827, 128
        %2244 = vxpose.xlu0.b32.cont [4/16] %v1828, 128
        %2245 = vxpose.xlu0.b32.cont [5/16] %v1829, 128
        %2246 = vxpose.xlu0.b32.cont [6/16] %v1830, 128
        %2247 = vxpose.xlu0.b32.cont [7/16] %v1831, 128
        %2248 = vxpose.xlu0.b32.cont [8/16] %v1832, 128
        %2249 = vxpose.xlu0.b32.cont [9/16] %v1833, 128
        %2250 = vxpose.xlu0.b32.cont [10/16] %v1834, 128
        %2251 = vxpose.xlu0.b32.cont [11/16] %v1835, 128
        %2252 = vxpose.xlu0.b32.cont [12/16] %v1836, 128
        %2253 = vxpose.xlu0.b32.cont [13/16] %v1837, 128
        %2254 = vxpose.xlu0.b32.cont [14/16] %v1838, 128
        %2255 = vxpose.xlu0.b32.cont [15/16] %v1839, 128
        %2256 = vxpose.xlu0.b32.end [16/16] %v1840, 128
        %v2257 = vpop.trf.xlu0
        %v2258 = vpop.trf.xlu0
        %v2259 = vpop.trf.xlu0
        %v2260 = vpop.trf.xlu0
        %v2261 = vpop.trf.xlu0
        %v2262 = vpop.trf.xlu0
        %v2263 = vpop.trf.xlu0
        %v2264 = vpop.trf.xlu0
        %v2265 = vpop.trf.xlu0
        %v2266 = vpop.trf.xlu0
        %v2267 = vpop.trf.xlu0
        %v2268 = vpop.trf.xlu0
        %v2269 = vpop.trf.xlu0
        %v2270 = vpop.trf.xlu0
        %v2271 = vpop.trf.xlu0
        %v2272 = vpop.trf.xlu0
        %2273 = vxpose.xlu0.b32.start [1/16] %v1841, 128
        %2274 = vxpose.xlu0.b32.cont [2/16] %v1842, 128
        %2275 = vxpose.xlu0.b32.cont [3/16] %v1843, 128
        %2276 = vxpose.xlu0.b32.cont [4/16] %v1844, 128
        %2277 = vxpose.xlu0.b32.cont [5/16] %v1845, 128
        %2278 = vxpose.xlu0.b32.cont [6/16] %v1846, 128
        %2279 = vxpose.xlu0.b32.cont [7/16] %v1847, 128
        %2280 = vxpose.xlu0.b32.cont [8/16] %v1848, 128
        %2281 = vxpose.xlu0.b32.cont [9/16] %v1849, 128
        %2282 = vxpose.xlu0.b32.cont [10/16] %v1850, 128
        %2283 = vxpose.xlu0.b32.cont [11/16] %v1851, 128
        %2284 = vxpose.xlu0.b32.cont [12/16] %v1852, 128
        %2285 = vxpose.xlu0.b32.cont [13/16] %v1853, 128
        %2286 = vxpose.xlu0.b32.cont [14/16] %v1854, 128
        %2287 = vxpose.xlu0.b32.cont [15/16] %v1855, 128
        %2288 = vxpose.xlu0.b32.end [16/16] %v1856, 128
        %v2289 = vpop.trf.xlu0
        %v2290 = vpop.trf.xlu0
        %v2291 = vpop.trf.xlu0
        %v2292 = vpop.trf.xlu0
        %v2293 = vpop.trf.xlu0
        %v2294 = vpop.trf.xlu0
        %v2295 = vpop.trf.xlu0
        %v2296 = vpop.trf.xlu0
        %v2297 = vpop.trf.xlu0
        %v2298 = vpop.trf.xlu0
        %v2299 = vpop.trf.xlu0
        %v2300 = vpop.trf.xlu0
        %v2301 = vpop.trf.xlu0
        %v2302 = vpop.trf.xlu0
        %v2303 = vpop.trf.xlu0
        %v2304 = vpop.trf.xlu0
        %2305 = vxpose.xlu0.b32.start [1/16] %v1857, 128
        %2306 = vxpose.xlu0.b32.cont [2/16] %v1858, 128
        %2307 = vxpose.xlu0.b32.cont [3/16] %v1859, 128
        %2308 = vxpose.xlu0.b32.cont [4/16] %v1860, 128
        %2309 = vxpose.xlu0.b32.cont [5/16] %v1861, 128
        %2310 = vxpose.xlu0.b32.cont [6/16] %v1862, 128
        %2311 = vxpose.xlu0.b32.cont [7/16] %v1863, 128
        %2312 = vxpose.xlu0.b32.cont [8/16] %v1864, 128
        %2313 = vxpose.xlu0.b32.cont [9/16] %v1865, 128
        %2314 = vxpose.xlu0.b32.cont [10/16] %v1866, 128
        %2315 = vxpose.xlu0.b32.cont [11/16] %v1867, 128
        %2316 = vxpose.xlu0.b32.cont [12/16] %v1868, 128
        %2317 = vxpose.xlu0.b32.cont [13/16] %v1869, 128
        %2318 = vxpose.xlu0.b32.cont [14/16] %v1870, 128
        %2319 = vxpose.xlu0.b32.cont [15/16] %v1871, 128
        %2320 = vxpose.xlu0.b32.end [16/16] %v1872, 128
        %v2321 = vpop.trf.xlu0
        %v2322 = vpop.trf.xlu0
        %v2323 = vpop.trf.xlu0
        %v2324 = vpop.trf.xlu0
        %v2325 = vpop.trf.xlu0
        %v2326 = vpop.trf.xlu0
        %v2327 = vpop.trf.xlu0
        %v2328 = vpop.trf.xlu0
        %v2329 = vpop.trf.xlu0
        %v2330 = vpop.trf.xlu0
        %v2331 = vpop.trf.xlu0
        %v2332 = vpop.trf.xlu0
        %v2333 = vpop.trf.xlu0
        %v2334 = vpop.trf.xlu0
        %v2335 = vpop.trf.xlu0
        %v2336 = vpop.trf.xlu0
        %2337 = vxpose.xlu0.b32.start [1/16] %v1873, 128
        %2338 = vxpose.xlu0.b32.cont [2/16] %v1874, 128
        %2339 = vxpose.xlu0.b32.cont [3/16] %v1875, 128
        %2340 = vxpose.xlu0.b32.cont [4/16] %v1876, 128
        %2341 = vxpose.xlu0.b32.cont [5/16] %v1877, 128
        %2342 = vxpose.xlu0.b32.cont [6/16] %v1878, 128
        %2343 = vxpose.xlu0.b32.cont [7/16] %v1879, 128
        %2344 = vxpose.xlu0.b32.cont [8/16] %v1880, 128
        %2345 = vxpose.xlu0.b32.cont [9/16] %v1881, 128
        %2346 = vxpose.xlu0.b32.cont [10/16] %v1882, 128
        %2347 = vxpose.xlu0.b32.cont [11/16] %v1883, 128
        %2348 = vxpose.xlu0.b32.cont [12/16] %v1884, 128
        %2349 = vxpose.xlu0.b32.cont [13/16] %v1885, 128
        %2350 = vxpose.xlu0.b32.cont [14/16] %v1886, 128
        %2351 = vxpose.xlu0.b32.cont [15/16] %v1887, 128
        %2352 = vxpose.xlu0.b32.end [16/16] %v1888, 128
        %v2353 = vpop.trf.xlu0
        %v2354 = vpop.trf.xlu0
        %v2355 = vpop.trf.xlu0
        %v2356 = vpop.trf.xlu0
        %v2357 = vpop.trf.xlu0
        %v2358 = vpop.trf.xlu0
        %v2359 = vpop.trf.xlu0
        %v2360 = vpop.trf.xlu0
        %v2361 = vpop.trf.xlu0
        %v2362 = vpop.trf.xlu0
        %v2363 = vpop.trf.xlu0
        %v2364 = vpop.trf.xlu0
        %v2365 = vpop.trf.xlu0
        %v2366 = vpop.trf.xlu0
        %v2367 = vpop.trf.xlu0
        %v2368 = vpop.trf.xlu0
        %2369 = vxpose.xlu0.b32.start [1/16] %v1889, 128
        %2370 = vxpose.xlu0.b32.cont [2/16] %v1890, 128
        %2371 = vxpose.xlu0.b32.cont [3/16] %v1891, 128
        %2372 = vxpose.xlu0.b32.cont [4/16] %v1892, 128
        %2373 = vxpose.xlu0.b32.cont [5/16] %v1893, 128
        %2374 = vxpose.xlu0.b32.cont [6/16] %v1894, 128
        %2375 = vxpose.xlu0.b32.cont [7/16] %v1895, 128
        %2376 = vxpose.xlu0.b32.cont [8/16] %v1896, 128
        %2377 = vxpose.xlu0.b32.cont [9/16] %v1897, 128
        %2378 = vxpose.xlu0.b32.cont [10/16] %v1898, 128
        %2379 = vxpose.xlu0.b32.cont [11/16] %v1899, 128
        %2380 = vxpose.xlu0.b32.cont [12/16] %v1900, 128
        %2381 = vxpose.xlu0.b32.cont [13/16] %v1901, 128
        %2382 = vxpose.xlu0.b32.cont [14/16] %v1902, 128
        %2383 = vxpose.xlu0.b32.cont [15/16] %v1903, 128
        %2384 = vxpose.xlu0.b32.end [16/16] %v1904, 128
        %v2385 = vpop.trf.xlu0
        %v2386 = vpop.trf.xlu0
        %v2387 = vpop.trf.xlu0
        %v2388 = vpop.trf.xlu0
        %v2389 = vpop.trf.xlu0
        %v2390 = vpop.trf.xlu0
        %v2391 = vpop.trf.xlu0
        %v2392 = vpop.trf.xlu0
        %v2393 = vpop.trf.xlu0
        %v2394 = vpop.trf.xlu0
        %v2395 = vpop.trf.xlu0
        %v2396 = vpop.trf.xlu0
        %v2397 = vpop.trf.xlu0
        %v2398 = vpop.trf.xlu0
        %v2399 = vpop.trf.xlu0
        %v2400 = vpop.trf.xlu0
        %2401 = vxpose.xlu0.b32.start [1/16] %v1905, 128
        %2402 = vxpose.xlu0.b32.cont [2/16] %v1906, 128
        %2403 = vxpose.xlu0.b32.cont [3/16] %v1907, 128
        %2404 = vxpose.xlu0.b32.cont [4/16] %v1908, 128
        %2405 = vxpose.xlu0.b32.cont [5/16] %v1909, 128
        %2406 = vxpose.xlu0.b32.cont [6/16] %v1910, 128
        %2407 = vxpose.xlu0.b32.cont [7/16] %v1911, 128
        %2408 = vxpose.xlu0.b32.cont [8/16] %v1912, 128
        %2409 = vxpose.xlu0.b32.cont [9/16] %v1913, 128
        %2410 = vxpose.xlu0.b32.cont [10/16] %v1914, 128
        %2411 = vxpose.xlu0.b32.cont [11/16] %v1915, 128
        %2412 = vxpose.xlu0.b32.cont [12/16] %v1916, 128
        %2413 = vxpose.xlu0.b32.cont [13/16] %v1917, 128
        %2414 = vxpose.xlu0.b32.cont [14/16] %v1918, 128
        %2415 = vxpose.xlu0.b32.cont [15/16] %v1919, 128
        %2416 = vxpose.xlu0.b32.end [16/16] %v1920, 128
        %v2417 = vpop.trf.xlu0
        %v2418 = vpop.trf.xlu0
        %v2419 = vpop.trf.xlu0
        %v2420 = vpop.trf.xlu0
        %v2421 = vpop.trf.xlu0
        %v2422 = vpop.trf.xlu0
        %v2423 = vpop.trf.xlu0
        %v2424 = vpop.trf.xlu0
        %v2425 = vpop.trf.xlu0
        %v2426 = vpop.trf.xlu0
        %v2427 = vpop.trf.xlu0
        %v2428 = vpop.trf.xlu0
        %v2429 = vpop.trf.xlu0
        %v2430 = vpop.trf.xlu0
        %v2431 = vpop.trf.xlu0
        %v2432 = vpop.trf.xlu0
        %2433 = vst [vmem:[%s247] sm:$0xff] %v1937
        %2434 = vst [vmem:[%s247 + $0x8] sm:$0xff] %v1969
        %2435 = vst [vmem:[%s247 + $0x10] sm:$0xff] %v1938
        %2436 = vst [vmem:[%s247 + $0x18] sm:$0xff] %v1970
        %2437 = vst [vmem:[%s247 + $0x20] sm:$0xff] %v1939
        %2438 = vst [vmem:[%s247 + $0x28] sm:$0xff] %v1971
        %2439 = vst [vmem:[%s247 + $0x30] sm:$0xff] %v1940
        %2440 = vst [vmem:[%s247 + $0x38] sm:$0xff] %v1972
        %2441 = vst [vmem:[%s247 + $0x40] sm:$0xff] %v1941
        %2442 = vst [vmem:[%s247 + $0x48] sm:$0xff] %v1973
        %2443 = vst [vmem:[%s247 + $0x50] sm:$0xff] %v1942
        %2444 = vst [vmem:[%s247 + $0x58] sm:$0xff] %v1974
        %2445 = vst [vmem:[%s247 + $0x60] sm:$0xff] %v1943
        %2446 = vst [vmem:[%s247 + $0x68] sm:$0xff] %v1975
        %2447 = vst [vmem:[%s247 + $0x70] sm:$0xff] %v1944
        %2448 = vst [vmem:[%s247 + $0x78] sm:$0xff] %v1976
        %2449 = vst [vmem:[%s247 + $0x80] sm:$0xff] %v1945
        %2450 = vst [vmem:[%s247 + $0x88] sm:$0xff] %v1977
        %2451 = vst [vmem:[%s247 + $0x90] sm:$0xff] %v1946
        %2452 = vst [vmem:[%s247 + $0x98] sm:$0xff] %v1978
        %2453 = vst [vmem:[%s247 + $0xa0] sm:$0xff] %v1947
        %2454 = vst [vmem:[%s247 + $0xa8] sm:$0xff] %v1979
        %2455 = vst [vmem:[%s247 + $0xb0] sm:$0xff] %v1948
        %2456 = vst [vmem:[%s247 + $0xb8] sm:$0xff] %v1980
        %2457 = vst [vmem:[%s247 + $0xc0] sm:$0xff] %v1949
        %2458 = vst [vmem:[%s247 + $0xc8] sm:$0xff] %v1981
        %2459 = vst [vmem:[%s247 + $0xd0] sm:$0xff] %v1950
        %2460 = vst [vmem:[%s247 + $0xd8] sm:$0xff] %v1982
        %2461 = vst [vmem:[%s247 + $0xe0] sm:$0xff] %v1951
        %2462 = vst [vmem:[%s247 + $0xe8] sm:$0xff] %v1983
        %2463 = vst [vmem:[%s247 + $0xf0] sm:$0xff] %v1952
        %2464 = vst [vmem:[%s247 + $0xf8] sm:$0xff] %v1984
        %2465 = vst [vmem:[%s247 + $0x100] sm:$0xff] %v2001
        %2466 = vst [vmem:[%s247 + $0x108] sm:$0xff] %v2033
        %2467 = vst [vmem:[%s247 + $0x110] sm:$0xff] %v2002
        %2468 = vst [vmem:[%s247 + $0x118] sm:$0xff] %v2034
        %2469 = vst [vmem:[%s247 + $0x120] sm:$0xff] %v2003
        %2470 = vst [vmem:[%s247 + $0x128] sm:$0xff] %v2035
        %2471 = vst [vmem:[%s247 + $0x130] sm:$0xff] %v2004
        %2472 = vst [vmem:[%s247 + $0x138] sm:$0xff] %v2036
        %2473 = vst [vmem:[%s247 + $0x140] sm:$0xff] %v2005
        %2474 = vst [vmem:[%s247 + $0x148] sm:$0xff] %v2037
        %2475 = vst [vmem:[%s247 + $0x150] sm:$0xff] %v2006
        %2476 = vst [vmem:[%s247 + $0x158] sm:$0xff] %v2038
        %2477 = vst [vmem:[%s247 + $0x160] sm:$0xff] %v2007
        %2478 = vst [vmem:[%s247 + $0x168] sm:$0xff] %v2039
        %2479 = vst [vmem:[%s247 + $0x170] sm:$0xff] %v2008
        %2480 = vst [vmem:[%s247 + $0x178] sm:$0xff] %v2040
        %2481 = vst [vmem:[%s247 + $0x180] sm:$0xff] %v2009
        %2482 = vst [vmem:[%s247 + $0x188] sm:$0xff] %v2041
        %2483 = vst [vmem:[%s247 + $0x190] sm:$0xff] %v2010
        %2484 = vst [vmem:[%s247 + $0x198] sm:$0xff] %v2042
        %2485 = vst [vmem:[%s247 + $0x1a0] sm:$0xff] %v2011
        %2486 = vst [vmem:[%s247 + $0x1a8] sm:$0xff] %v2043
        %2487 = vst [vmem:[%s247 + $0x1b0] sm:$0xff] %v2012
        %2488 = vst [vmem:[%s247 + $0x1b8] sm:$0xff] %v2044
        %2489 = vst [vmem:[%s247 + $0x1c0] sm:$0xff] %v2013
        %2490 = vst [vmem:[%s247 + $0x1c8] sm:$0xff] %v2045
        %2491 = vst [vmem:[%s247 + $0x1d0] sm:$0xff] %v2014
        %2492 = vst [vmem:[%s247 + $0x1d8] sm:$0xff] %v2046
        %2493 = vst [vmem:[%s247 + $0x1e0] sm:$0xff] %v2015
        %2494 = vst [vmem:[%s247 + $0x1e8] sm:$0xff] %v2047
        %2495 = vst [vmem:[%s247 + $0x1f0] sm:$0xff] %v2016
        %2496 = vst [vmem:[%s247 + $0x1f8] sm:$0xff] %v2048
        %2497 = vst [vmem:[%s247 + $0x200] sm:$0xff] %v2065
        %2498 = vst [vmem:[%s247 + $0x208] sm:$0xff] %v2097
        %2499 = vst [vmem:[%s247 + $0x210] sm:$0xff] %v2066
        %2500 = vst [vmem:[%s247 + $0x218] sm:$0xff] %v2098
        %2501 = vst [vmem:[%s247 + $0x220] sm:$0xff] %v2067
        %2502 = vst [vmem:[%s247 + $0x228] sm:$0xff] %v2099
        %2503 = vst [vmem:[%s247 + $0x230] sm:$0xff] %v2068
        %2504 = vst [vmem:[%s247 + $0x238] sm:$0xff] %v2100
        %2505 = vst [vmem:[%s247 + $0x240] sm:$0xff] %v2069
        %2506 = vst [vmem:[%s247 + $0x248] sm:$0xff] %v2101
        %2507 = vst [vmem:[%s247 + $0x250] sm:$0xff] %v2070
        %2508 = vst [vmem:[%s247 + $0x258] sm:$0xff] %v2102
        %2509 = vst [vmem:[%s247 + $0x260] sm:$0xff] %v2071
        %2510 = vst [vmem:[%s247 + $0x268] sm:$0xff] %v2103
        %2511 = vst [vmem:[%s247 + $0x270] sm:$0xff] %v2072
        %2512 = vst [vmem:[%s247 + $0x278] sm:$0xff] %v2104
        %2513 = vst [vmem:[%s247 + $0x280] sm:$0xff] %v2073
        %2514 = vst [vmem:[%s247 + $0x288] sm:$0xff] %v2105
        %2515 = vst [vmem:[%s247 + $0x290] sm:$0xff] %v2074
        %2516 = vst [vmem:[%s247 + $0x298] sm:$0xff] %v2106
        %2517 = vst [vmem:[%s247 + $0x2a0] sm:$0xff] %v2075
        %2518 = vst [vmem:[%s247 + $0x2a8] sm:$0xff] %v2107
        %2519 = vst [vmem:[%s247 + $0x2b0] sm:$0xff] %v2076
        %2520 = vst [vmem:[%s247 + $0x2b8] sm:$0xff] %v2108
        %2521 = vst [vmem:[%s247 + $0x2c0] sm:$0xff] %v2077
        %2522 = vst [vmem:[%s247 + $0x2c8] sm:$0xff] %v2109
        %2523 = vst [vmem:[%s247 + $0x2d0] sm:$0xff] %v2078
        %2524 = vst [vmem:[%s247 + $0x2d8] sm:$0xff] %v2110
        %2525 = vst [vmem:[%s247 + $0x2e0] sm:$0xff] %v2079
        %2526 = vst [vmem:[%s247 + $0x2e8] sm:$0xff] %v2111
        %2527 = vst [vmem:[%s247 + $0x2f0] sm:$0xff] %v2080
        %2528 = vst [vmem:[%s247 + $0x2f8] sm:$0xff] %v2112
        %2529 = vst [vmem:[%s247 + $0x300] sm:$0xff] %v2129
        %2530 = vst [vmem:[%s247 + $0x308] sm:$0xff] %v2161
        %2531 = vst [vmem:[%s247 + $0x310] sm:$0xff] %v2130
        %2532 = vst [vmem:[%s247 + $0x318] sm:$0xff] %v2162
        %2533 = vst [vmem:[%s247 + $0x320] sm:$0xff] %v2131
        %2534 = vst [vmem:[%s247 + $0x328] sm:$0xff] %v2163
        %2535 = vst [vmem:[%s247 + $0x330] sm:$0xff] %v2132
        %2536 = vst [vmem:[%s247 + $0x338] sm:$0xff] %v2164
        %2537 = vst [vmem:[%s247 + $0x340] sm:$0xff] %v2133
        %2538 = vst [vmem:[%s247 + $0x348] sm:$0xff] %v2165
        %2539 = vst [vmem:[%s247 + $0x350] sm:$0xff] %v2134
        %2540 = vst [vmem:[%s247 + $0x358] sm:$0xff] %v2166
        %2541 = vst [vmem:[%s247 + $0x360] sm:$0xff] %v2135
        %2542 = vst [vmem:[%s247 + $0x368] sm:$0xff] %v2167
        %2543 = vst [vmem:[%s247 + $0x370] sm:$0xff] %v2136
        %2544 = vst [vmem:[%s247 + $0x378] sm:$0xff] %v2168
        %2545 = vst [vmem:[%s247 + $0x380] sm:$0xff] %v2137
        %2546 = vst [vmem:[%s247 + $0x388] sm:$0xff] %v2169
        %2547 = vst [vmem:[%s247 + $0x390] sm:$0xff] %v2138
        %2548 = vst [vmem:[%s247 + $0x398] sm:$0xff] %v2170
        %2549 = vst [vmem:[%s247 + $0x3a0] sm:$0xff] %v2139
        %2550 = vst [vmem:[%s247 + $0x3a8] sm:$0xff] %v2171
        %2551 = vst [vmem:[%s247 + $0x3b0] sm:$0xff] %v2140
        %2552 = vst [vmem:[%s247 + $0x3b8] sm:$0xff] %v2172
        %2553 = vst [vmem:[%s247 + $0x3c0] sm:$0xff] %v2141
        %2554 = vst [vmem:[%s247 + $0x3c8] sm:$0xff] %v2173
        %2555 = vst [vmem:[%s247 + $0x3d0] sm:$0xff] %v2142
        %2556 = vst [vmem:[%s247 + $0x3d8] sm:$0xff] %v2174
        %2557 = vst [vmem:[%s247 + $0x3e0] sm:$0xff] %v2143
        %2558 = vst [vmem:[%s247 + $0x3e8] sm:$0xff] %v2175
        %2559 = vst [vmem:[%s247 + $0x3f0] sm:$0xff] %v2144
        %2560 = vst [vmem:[%s247 + $0x3f8] sm:$0xff] %v2176
        %2561 = vst [vmem:[%s247 + $0x400] sm:$0xff] %v2193
        %2562 = vst [vmem:[%s247 + $0x408] sm:$0xff] %v2225
        %2563 = vst [vmem:[%s247 + $0x410] sm:$0xff] %v2194
        %2564 = vst [vmem:[%s247 + $0x418] sm:$0xff] %v2226
        %2565 = vst [vmem:[%s247 + $0x420] sm:$0xff] %v2195
        %2566 = vst [vmem:[%s247 + $0x428] sm:$0xff] %v2227
        %2567 = vst [vmem:[%s247 + $0x430] sm:$0xff] %v2196
        %2568 = vst [vmem:[%s247 + $0x438] sm:$0xff] %v2228
        %2569 = vst [vmem:[%s247 + $0x440] sm:$0xff] %v2197
        %2570 = vst [vmem:[%s247 + $0x448] sm:$0xff] %v2229
        %2571 = vst [vmem:[%s247 + $0x450] sm:$0xff] %v2198
        %2572 = vst [vmem:[%s247 + $0x458] sm:$0xff] %v2230
        %2573 = vst [vmem:[%s247 + $0x460] sm:$0xff] %v2199
        %2574 = vst [vmem:[%s247 + $0x468] sm:$0xff] %v2231
        %2575 = vst [vmem:[%s247 + $0x470] sm:$0xff] %v2200
        %2576 = vst [vmem:[%s247 + $0x478] sm:$0xff] %v2232
        %2577 = vst [vmem:[%s247 + $0x480] sm:$0xff] %v2201
        %2578 = vst [vmem:[%s247 + $0x488] sm:$0xff] %v2233
        %2579 = vst [vmem:[%s247 + $0x490] sm:$0xff] %v2202
        %2580 = vst [vmem:[%s247 + $0x498] sm:$0xff] %v2234
        %2581 = vst [vmem:[%s247 + $0x4a0] sm:$0xff] %v2203
        %2582 = vst [vmem:[%s247 + $0x4a8] sm:$0xff] %v2235
        %2583 = vst [vmem:[%s247 + $0x4b0] sm:$0xff] %v2204
        %2584 = vst [vmem:[%s247 + $0x4b8] sm:$0xff] %v2236
        %2585 = vst [vmem:[%s247 + $0x4c0] sm:$0xff] %v2205
        %2586 = vst [vmem:[%s247 + $0x4c8] sm:$0xff] %v2237
        %2587 = vst [vmem:[%s247 + $0x4d0] sm:$0xff] %v2206
        %2588 = vst [vmem:[%s247 + $0x4d8] sm:$0xff] %v2238
        %2589 = vst [vmem:[%s247 + $0x4e0] sm:$0xff] %v2207
        %2590 = vst [vmem:[%s247 + $0x4e8] sm:$0xff] %v2239
        %2591 = vst [vmem:[%s247 + $0x4f0] sm:$0xff] %v2208
        %2592 = vst [vmem:[%s247 + $0x4f8] sm:$0xff] %v2240
        %2593 = vst [vmem:[%s247 + $0x500] sm:$0xff] %v2257
        %2594 = vst [vmem:[%s247 + $0x508] sm:$0xff] %v2289
        %2595 = vst [vmem:[%s247 + $0x510] sm:$0xff] %v2258
        %2596 = vst [vmem:[%s247 + $0x518] sm:$0xff] %v2290
        %2597 = vst [vmem:[%s247 + $0x520] sm:$0xff] %v2259
        %2598 = vst [vmem:[%s247 + $0x528] sm:$0xff] %v2291
        %2599 = vst [vmem:[%s247 + $0x530] sm:$0xff] %v2260
        %2600 = vst [vmem:[%s247 + $0x538] sm:$0xff] %v2292
        %2601 = vst [vmem:[%s247 + $0x540] sm:$0xff] %v2261
        %2602 = vst [vmem:[%s247 + $0x548] sm:$0xff] %v2293
        %2603 = vst [vmem:[%s247 + $0x550] sm:$0xff] %v2262
        %2604 = vst [vmem:[%s247 + $0x558] sm:$0xff] %v2294
        %2605 = vst [vmem:[%s247 + $0x560] sm:$0xff] %v2263
        %2606 = vst [vmem:[%s247 + $0x568] sm:$0xff] %v2295
        %2607 = vst [vmem:[%s247 + $0x570] sm:$0xff] %v2264
        %2608 = vst [vmem:[%s247 + $0x578] sm:$0xff] %v2296
        %2609 = vst [vmem:[%s247 + $0x580] sm:$0xff] %v2265
        %2610 = vst [vmem:[%s247 + $0x588] sm:$0xff] %v2297
        %2611 = vst [vmem:[%s247 + $0x590] sm:$0xff] %v2266
        %2612 = vst [vmem:[%s247 + $0x598] sm:$0xff] %v2298
        %2613 = vst [vmem:[%s247 + $0x5a0] sm:$0xff] %v2267
        %2614 = vst [vmem:[%s247 + $0x5a8] sm:$0xff] %v2299
        %2615 = vst [vmem:[%s247 + $0x5b0] sm:$0xff] %v2268
        %2616 = vst [vmem:[%s247 + $0x5b8] sm:$0xff] %v2300
        %2617 = vst [vmem:[%s247 + $0x5c0] sm:$0xff] %v2269
        %2618 = vst [vmem:[%s247 + $0x5c8] sm:$0xff] %v2301
        %2619 = vst [vmem:[%s247 + $0x5d0] sm:$0xff] %v2270
        %2620 = vst [vmem:[%s247 + $0x5d8] sm:$0xff] %v2302
        %2621 = vst [vmem:[%s247 + $0x5e0] sm:$0xff] %v2271
        %2622 = vst [vmem:[%s247 + $0x5e8] sm:$0xff] %v2303
        %2623 = vst [vmem:[%s247 + $0x5f0] sm:$0xff] %v2272
        %2624 = vst [vmem:[%s247 + $0x5f8] sm:$0xff] %v2304
        %2625 = vst [vmem:[%s247 + $0x600] sm:$0xff] %v2321
        %2626 = vst [vmem:[%s247 + $0x608] sm:$0xff] %v2353
        %2627 = vst [vmem:[%s247 + $0x610] sm:$0xff] %v2322
        %2628 = vst [vmem:[%s247 + $0x618] sm:$0xff] %v2354
        %2629 = vst [vmem:[%s247 + $0x620] sm:$0xff] %v2323
        %2630 = vst [vmem:[%s247 + $0x628] sm:$0xff] %v2355
        %2631 = vst [vmem:[%s247 + $0x630] sm:$0xff] %v2324
        %2632 = vst [vmem:[%s247 + $0x638] sm:$0xff] %v2356
        %2633 = vst [vmem:[%s247 + $0x640] sm:$0xff] %v2325
        %2634 = vst [vmem:[%s247 + $0x648] sm:$0xff] %v2357
        %2635 = vst [vmem:[%s247 + $0x650] sm:$0xff] %v2326
        %2636 = vst [vmem:[%s247 + $0x658] sm:$0xff] %v2358
        %2637 = vst [vmem:[%s247 + $0x660] sm:$0xff] %v2327
        %2638 = vst [vmem:[%s247 + $0x668] sm:$0xff] %v2359
        %2639 = vst [vmem:[%s247 + $0x670] sm:$0xff] %v2328
        %2640 = vst [vmem:[%s247 + $0x678] sm:$0xff] %v2360
        %2641 = vst [vmem:[%s247 + $0x680] sm:$0xff] %v2329
        %2642 = vst [vmem:[%s247 + $0x688] sm:$0xff] %v2361
        %2643 = vst [vmem:[%s247 + $0x690] sm:$0xff] %v2330
        %2644 = vst [vmem:[%s247 + $0x698] sm:$0xff] %v2362
        %2645 = vst [vmem:[%s247 + $0x6a0] sm:$0xff] %v2331
        %2646 = vst [vmem:[%s247 + $0x6a8] sm:$0xff] %v2363
        %2647 = vst [vmem:[%s247 + $0x6b0] sm:$0xff] %v2332
        %2648 = vst [vmem:[%s247 + $0x6b8] sm:$0xff] %v2364
        %2649 = vst [vmem:[%s247 + $0x6c0] sm:$0xff] %v2333
        %2650 = vst [vmem:[%s247 + $0x6c8] sm:$0xff] %v2365
        %2651 = vst [vmem:[%s247 + $0x6d0] sm:$0xff] %v2334
        %2652 = vst [vmem:[%s247 + $0x6d8] sm:$0xff] %v2366
        %2653 = vst [vmem:[%s247 + $0x6e0] sm:$0xff] %v2335
        %2654 = vst [vmem:[%s247 + $0x6e8] sm:$0xff] %v2367
        %2655 = vst [vmem:[%s247 + $0x6f0] sm:$0xff] %v2336
        %2656 = vst [vmem:[%s247 + $0x6f8] sm:$0xff] %v2368
        %2657 = vst [vmem:[%s247 + $0x700] sm:$0xff] %v2385
        %2658 = vst [vmem:[%s247 + $0x708] sm:$0xff] %v2417
        %2659 = vst [vmem:[%s247 + $0x710] sm:$0xff] %v2386
        %2660 = vst [vmem:[%s247 + $0x718] sm:$0xff] %v2418
        %2661 = vst [vmem:[%s247 + $0x720] sm:$0xff] %v2387
        %2662 = vst [vmem:[%s247 + $0x728] sm:$0xff] %v2419
        %2663 = vst [vmem:[%s247 + $0x730] sm:$0xff] %v2388
        %2664 = vst [vmem:[%s247 + $0x738] sm:$0xff] %v2420
        %2665 = vst [vmem:[%s247 + $0x740] sm:$0xff] %v2389
        %2666 = vst [vmem:[%s247 + $0x748] sm:$0xff] %v2421
        %2667 = vst [vmem:[%s247 + $0x750] sm:$0xff] %v2390
        %2668 = vst [vmem:[%s247 + $0x758] sm:$0xff] %v2422
        %2669 = vst [vmem:[%s247 + $0x760] sm:$0xff] %v2391
        %2670 = vst [vmem:[%s247 + $0x768] sm:$0xff] %v2423
        %2671 = vst [vmem:[%s247 + $0x770] sm:$0xff] %v2392
        %2672 = vst [vmem:[%s247 + $0x778] sm:$0xff] %v2424
        %2673 = vst [vmem:[%s247 + $0x780] sm:$0xff] %v2393
        %2674 = vst [vmem:[%s247 + $0x788] sm:$0xff] %v2425
        %2675 = vst [vmem:[%s247 + $0x790] sm:$0xff] %v2394
        %2676 = vst [vmem:[%s247 + $0x798] sm:$0xff] %v2426
        %2677 = vst [vmem:[%s247 + $0x7a0] sm:$0xff] %v2395
        %2678 = vst [vmem:[%s247 + $0x7a8] sm:$0xff] %v2427
        %2679 = vst [vmem:[%s247 + $0x7b0] sm:$0xff] %v2396
        %2680 = vst [vmem:[%s247 + $0x7b8] sm:$0xff] %v2428
        %2681 = vst [vmem:[%s247 + $0x7c0] sm:$0xff] %v2397
        %2682 = vst [vmem:[%s247 + $0x7c8] sm:$0xff] %v2429
        %2683 = vst [vmem:[%s247 + $0x7d0] sm:$0xff] %v2398
        %2684 = vst [vmem:[%s247 + $0x7d8] sm:$0xff] %v2430
        %2685 = vst [vmem:[%s247 + $0x7e0] sm:$0xff] %v2399
        %2686 = vst [vmem:[%s247 + $0x7e8] sm:$0xff] %v2431
        %2687 = vst [vmem:[%s247 + $0x7f0] sm:$0xff] %v2400
        %2688 = vst [vmem:[%s247 + $0x7f8] sm:$0xff] %v2432
        %s2689 = sand.u32 %s102, 1
        %s2690 = scalar_lea.sflag [#allocation4], %s2689
        %s2691 = sand.u32 %s102, 1
        %s2692 = smul.addr %s2691, 2048
        %s2693 = scalar_lea.vmem [#allocation8], %s2692
        %s2694 = sand.u32 %s128, 1
        %s2695 = scalar_lea.sflag [#allocation10], %s2694
        %s2696 = sand.u32 %s128, 1
        %s2697 = smul.addr %s2696, 8
        %s2698 = scalar_lea.vmem [#allocation9], %s2697
        // Predicated region
        $region45: #{tpu_custom_call.1} parent=31 // pred_check
          %p2699 = pneg %p112
        $region46: #{tpu_custom_call.1} parent=31 // pred_check_branch
          %2701 = sbr.rel (%p2699) target = $region48
        $region47: #{tpu_custom_call.1} parent=31 // pred_region
          %s2702 = smul.u32 8, %s26
          %s2704 = ssub.s32 32768, 32768
          %2705 = vsyncadd %s2690, %s2704
          %s2706 = smul.addr %s2702, 32
          %s2707 = smul.addr %s2706, 128
          %s2708 = scalar_lea.hbm %s3, %s2707
          %s2709 = sshll.u32 %s2693, 4
          %s2710 = int_to_ptr.vmem [resolvable:$true] %s2709
          %2715 = dma.vmem_to_hbm [thread:$0]  %s2710, 32768, %s2708, %s2690, 256, 256, 16
        $region48: #{tpu_custom_call.1} parent=31 // pred_fallthru
          _
        // Predicated region
        $region49: #{tpu_custom_call.1} parent=31 // pred_check
          %p2716 = pneg %p138
        $region50: #{tpu_custom_call.1} parent=31 // pred_check_branch
          %2718 = sbr.rel (%p2716) target = $region52
        $region51: #{tpu_custom_call.1} parent=31 // pred_region
          %s2720 = ssub.s32 128, 128
          %2721 = vsyncadd %s2695, %s2720
          %s2722 = smul.addr %s26, 128
          %s2723 = scalar_lea.hbm %s4, %s2722
          %s2725 = sshll.u32 %s2698, 4
          %s2726 = int_to_ptr.vmem [resolvable:$true] %s2725
          %2728 = dma.vmem_to_hbm [thread:$0]  %s2726, 128, %s2723, %s2695
        $region52: #{tpu_custom_call.1} parent=31 // pred_fallthru
          _
      $region32: #{tpu_custom_call.1} parent=5 // pred_fallthru
        _
      %p2729 = scmp.le.s32.totalorder 2, %s21
      // Predicated region
      $region53: #{tpu_custom_call.1} parent=5 // pred_check
        %p2730 = pneg %p2729
      $region54: #{tpu_custom_call.1} parent=5 // pred_check_branch
        %2732 = sbr.rel (%p2730) target = $region56
      $region55: #{tpu_custom_call.1} parent=5 // pred_region
        %s2733 = ssub.s32 %s21, 2
        // Predicated region
        $region57: #{tpu_custom_call.1} parent=55 // pred_check
          %p2734 = pneg %p118
        $region58: #{tpu_custom_call.1} parent=55 // pred_check_branch
          %2736 = sbr.rel (%p2734) target = $region60
        $region59: #{tpu_custom_call.1} parent=55 // pred_region
          %s2737 = sand.u32 %s103, 1
          %s2738 = scalar_lea.sflag [#allocation4], %s2737
          %s2739 = sand.u32 %s103, 1
          %s2740 = smul.addr %s2739, 2048
          %s2741 = scalar_lea.vmem [#allocation8], %s2740
          %2742 = dma.done %s2738, 32768
        $region60: #{tpu_custom_call.1} parent=55 // pred_fallthru
          _
        // Predicated region
        $region61: #{tpu_custom_call.1} parent=55 // pred_check
          %p2743 = pneg %p144
        $region62: #{tpu_custom_call.1} parent=55 // pred_check_branch
          %2745 = sbr.rel (%p2743) target = $region64
        $region63: #{tpu_custom_call.1} parent=55 // pred_region
          %s2746 = sand.u32 %s129, 1
          %s2747 = scalar_lea.sflag [#allocation10], %s2746
          %s2748 = sand.u32 %s129, 1
          %s2749 = smul.addr %s2748, 8
          %s2750 = scalar_lea.vmem [#allocation9], %s2749
          %2751 = dma.done %s2747, 128
        $region64: #{tpu_custom_call.1} parent=55 // pred_fallthru
          _
      $region56: #{tpu_custom_call.1} parent=5 // pred_fallthru
        _
    $region6: #{tpu_custom_call.1} parent=1 // loop_footer
      %s25 = sadd.s32 1, %s21
    $region7: #{tpu_custom_call.1} parent=1 // loop_footer_branch
      %20 = sbr.rel target = $region3
    $region8: #{tpu_custom_call.1} parent=1 // loop_exit
      _
    %2752 = vsyncpa [#allocation3], 1
    %s2753 = scalar_lea.sflag [#allocation3], 1
    %2754 = vsyncpa %s2753, 1
    %2755 = vsyncpa [#allocation6], 1
    %2756 = vsyncpa [#allocation4], 1
    %s2757 = scalar_lea.sflag [#allocation4], 1
    %2758 = vsyncpa %s2757, 1
    %2759 = vsyncpa [#allocation10], 1
    %s2760 = scalar_lea.sflag [#allocation10], 1
    %2761 = vsyncpa %s2760, 1

</llo_original>
